<compile_context>
chip_gen: v7x
topology: tpu7x:2x2x1
jax: 0.10.0
libtpu: 0.0.40
codegen_flags: <defaults>
</compile_context>

<pallas_src>
import functools
import numpy as np
import jax
import jax.numpy as jnp
from jax.experimental import pallas as pl
from jax.experimental.pallas import tpu as pltpu


def _agf_kernel(x_ref, m_ref, fw_ref, fh_ref, o_ref):
    # x_ref : (cb*h, w)      f32  input rows (batch/channel fftshift already
    #                             applied via the BlockSpec index_map)
    # m_ref : (2, cb, h, w)  f32  spectral filter [Mr; Mi], pre-ifftshifted,
    #                             carrying the residual 1/sqrt(hw) scale
    # fw_ref: (2, w, w)      bf16 [Re; Im] of DFT_w / sqrt(w)
    # fh_ref: (2, h, h)      bf16 [Re; Im] of DFT_h / sqrt(h)
    # o_ref : (cb*h, w)      f32
    _, cb, h, w = m_ref.shape
    bf16 = jnp.bfloat16

    fwr = fw_ref[0]
    fwi = fw_ref[1]
    # One broadcast each, reused by four einsums (hoisted, not re-emitted).
    fhr_b = jnp.broadcast_to(fh_ref[0], (cb, h, h))
    fhi_b = jnp.broadcast_to(fh_ref[1], (cb, h, h))

    def rdot(a, b):   # (rows, k) @ (k, n) on the MXU, f32 accumulation
        return jnp.dot(a, b, preferred_element_type=jnp.float32)

    def bdot(a, b):   # channel-batched (cb, h, k) @ (cb, k, n)
        return jnp.einsum("cjk,ckn->cjn", a, b,
                          preferred_element_type=jnp.float32)

    # Forward DFT along w: U = X @ Fw   (M = cb*h rows on the MXU).
    x = x_ref[...].astype(bf16)
    ur = rdot(x, fwr).reshape(cb, h, w).astype(bf16)
    ui = rdot(x, fwi).reshape(cb, h, w).astype(bf16)

    # Forward DFT along h: Q = Fh @ U   (complex, channel-batched).
    qr = bdot(fhr_b, ur) - bdot(fhi_b, ui)
    qi = bdot(fhr_b, ui) + bdot(fhi_b, ur)

    # Spectral filter on the VPU (f32): R = Q * M.
    mr = m_ref[0]
    mi = m_ref[1]
    rr = (qr * mr - qi * mi).astype(bf16)
    ri = (qr * mi + qi * mr).astype(bf16)

    # Inverse DFT along h: A = conj(Fh) @ R.
    ar = bdot(fhr_b, rr) + bdot(fhi_b, ri)
    ai = bdot(fhr_b, ri) - bdot(fhi_b, rr)

    # Inverse DFT along w, real part only: Y = Ar @ Fwr + Ai @ Fwi.
    ar2 = ar.reshape(cb * h, w).astype(bf16)
    ai2 = ai.reshape(cb * h, w).astype(bf16)
    o_ref[...] = rdot(ar2, fwr) + rdot(ai2, fwi)


@functools.lru_cache(maxsize=8)
def _dft_pair(n):
    """[Re; Im] of the ortho-scaled 1-D DFT matrix DFT_n / sqrt(n)."""
    k = np.arange(n)
    F = np.exp(-2j * np.pi * np.outer(k, k) / n) / np.sqrt(n)
    return np.ascontiguousarray(np.stack([F.real, F.imag]).astype(np.float32))


def _pick_channel_block(c, h, w):
    """Channel tile size cb: (c//2) % cb == 0 keeps the fftshift channel roll
    block-granular (so it folds into the index_map), cb*h rows feed the MXU,
    and the live complex intermediates stay bounded.  Since cb <= c//2 the
    grid always has >= 2 channel steps (megacore parallelism even for b=1)."""
    if c <= 1:
        return 1
    cands = [d for d in range(1, c // 2 + 1)
             if (c // 2) % d == 0 and c % d == 0]
    best = 1
    for cb in cands:
        if (cb * h) % 8 != 0:          # sublane alignment of the row block
            continue
        live_bytes = 14 * cb * h * w * 4   # rough live f32 intermediates
        if cb * h <= 2048 and live_bytes <= 8 * 1024 * 1024:
            best = max(best, cb)
    return best


@functools.partial(jax.jit, static_argnames=("ratio",))
def adaptive_global_filter(x, filt, *, ratio):
    """Pallas implementation of Adaptive_global_filter.forward (dim=c, H=h, W=w)."""
    b, c, h, w = x.shape
    assert filt.shape == (c, h, w, 2)
    # TODO(synk): support h not a multiple of 8 (needs padded sublane tiling).
    assert h % 8 == 0
    crow, ccol = h // 2, w // 2

    # Masks exactly as mutated in the PyTorch forward.
    mask_low = jnp.zeros((h, w), jnp.float32)
    mask_low = mask_low.at[crow - ratio:crow + ratio,
                           ccol - ratio:ccol + ratio].set(1.0)
    mask_high = 1.0 - mask_low

    # Combined spectral map.  The spatial fftshift...ifftshift pair is folded
    # in here; the fft 'ortho' / ifft 'backward' normalization is split as
    # 1/sqrt(h), 1/sqrt(w) on the DFT operators (used for both directions) and
    # the residual 1/sqrt(hw) here, keeping all intermediates O(1) for bf16.
    weight = filt[..., 0] + 1j * filt[..., 1]                  # (c, h, w) complex
    M = mask_low[None] * weight + mask_high[None]
    M = jnp.fft.ifftshift(M, axes=(-2, -1)) * (1.0 / np.sqrt(h * w))
    m_all = jnp.stack([jnp.real(M), jnp.imag(M)], axis=0).astype(jnp.float32)

    fh = jnp.asarray(_dft_pair(h), dtype=jnp.bfloat16)         # (2, h, h)
    fw = jnp.asarray(_dft_pair(w), dtype=jnp.bfloat16)         # (2, w, w)

    cb = _pick_channel_block(c, h, w)
    ncb = c // cb                       # channel blocks
    ncs = (c // 2) // cb                # channel-block shift of fftshift
    nbs = b // 2                        # batch shift of fftshift
    cbh = cb * h

    x3 = x.reshape(b, c * h, w)         # contiguous -> free

    # VMEM budget: per-step blocks (double-buffered) + resident constants +
    # live intermediates.  Explicit so v5e's 16 MiB scoped default never bites.
    block_io = 2 * cbh * w * 4                      # x block + out block (f32)
    block_m = 2 * cb * h * w * 4                    # stacked Mr/Mi block
    consts = (2 * w * w + 2 * h * h) * 2            # bf16 DFT operators
    live = 14 * cb * h * w * 4                      # complex intermediates
    vmem_need = 2 * (block_io + block_m) + consts + live
    vmem_limit = int(min(100 * 2**20, max(32 * 2**20, 2 * vmem_need)))

    out = pl.pallas_call(
        _agf_kernel,
        out_shape=jax.ShapeDtypeStruct((b, c * h, w), jnp.float32),
        grid=(b, ncb),
        in_specs=[
            # Both halves of torch.fft.fftshift(no dim) over (batch, channel)
            # are folded into this index_map: read the source batch/channel
            # block that lands at output block (bi, ci).
            pl.BlockSpec((None, cbh, w),
                         lambda bi, ci: ((bi + b - nbs) % b,
                                         (ci + ncb - ncs) % ncb, 0)),
            # Stacked [Mr; Mi], indexed by the *output* channel block.
            pl.BlockSpec((2, cb, h, w), lambda bi, ci: (0, ci, 0, 0)),
            # DFT operators: constant index -> DMA'd once, VMEM-resident.
            pl.BlockSpec((2, w, w), lambda bi, ci: (0, 0, 0)),
            pl.BlockSpec((2, h, h), lambda bi, ci: (0, 0, 0)),
        ],
        out_specs=pl.BlockSpec((None, cbh, w), lambda bi, ci: (bi, ci, 0)),
        compiler_params=pltpu.CompilerParams(
            dimension_semantics=("parallel", "parallel"),
            vmem_limit_bytes=vmem_limit),
    )(x3, m_all, fw, fh)

    return out.reshape(b, c, h, w)


def _reference(x, filt, ratio):
    """Pure-JAX replica of the exact PyTorch forward semantics (for checking)."""
    b, c, h, w = x.shape
    crow, ccol = h // 2, w // 2
    mask_low = jnp.zeros((h, w), jnp.float32)
    mask_low = mask_low.at[crow - ratio:crow + ratio,
                           ccol - ratio:ccol + ratio].set(1.0)
    mask_high = 1.0 - mask_low
    x_fre = jnp.fft.fftshift(jnp.fft.fft2(x, norm='ortho'))    # shifts ALL dims
    weight = filt[..., 0] + 1j * filt[..., 1]
    x_fre_low = x_fre * mask_low * weight
    x_fre_high = x_fre * mask_high
    x_fre_new = x_fre_low + x_fre_high
    return jnp.real(jnp.fft.ifft2(jnp.fft.ifftshift(x_fre_new, axes=(-2, -1))))


if __name__ == "__main__":
    # Small shapes consistent with the module: dim == channels, H == h, W == w.
    b, c, h, w, ratio = 2, 4, 16, 16, 4
    key = jax.random.PRNGKey(0)
    kx, kf = jax.random.split(key)
    x = jax.random.normal(kx, (b, c, h, w), dtype=jnp.float32)
    filt = jax.random.normal(kf, (c, h, w, 2), dtype=jnp.float32)  # nn.Parameter randn

    out = jax.block_until_ready(adaptive_global_filter(x, filt, ratio=ratio))
    ref = jax.block_until_ready(_reference(x, filt, ratio))
    np.testing.assert_allclose(np.asarray(out), np.asarray(ref),
                               rtol=2e-3, atol=2e-3)
    print("KERNEL_OK")
</pallas_src>

<mosaic_0001>
module attributes {stable_mosaic.version = 11 : i64} {
  func.func @_agf_kernel(%arg0: i32, %arg1: i32, %arg2: memref<1x32x16xf32, #tpu.memory_space<vmem>>, %arg3: memref<2x2x16x16xf32, #tpu.memory_space<vmem>>, %arg4: memref<2x16x16xbf16, #tpu.memory_space<vmem>>, %arg5: memref<2x16x16xbf16, #tpu.memory_space<vmem>>, %arg6: memref<1x32x16xf32, #tpu.memory_space<vmem>>) attributes {dimension_semantics = [#tpu.dimension_semantics<parallel>, #tpu.dimension_semantics<parallel>], iteration_bounds = array<i64: 2, 2>, scalar_prefetch = 0 : i64, scratch_operands = 0 : i64, tpu.core_type = #tpu.core_type<tc>, window_params = [{transform_indices = @transform_0, window_bounds = array<i64: 1, 32, 16>}, {transform_indices = @transform_1, window_bounds = array<i64: 2, 2, 16, 16>}, {pipeline_mode = #tpu.pipeline_mode<synchronous>, transform_indices = @transform_2, window_bounds = array<i64: 2, 16, 16>}, {pipeline_mode = #tpu.pipeline_mode<synchronous>, transform_indices = @transform_3, window_bounds = array<i64: 2, 16, 16>}, {transform_indices = @transform_4, window_bounds = array<i64: 1, 32, 16>}]} {
    %c0 = arith.constant 0 : index
    %c0_0 = arith.constant 0 : index
    %c0_1 = arith.constant 0 : index
    %0 = vector.load %arg4[%c0, %c0_0, %c0_1] : memref<2x16x16xbf16, #tpu.memory_space<vmem>>, vector<1x16x16xbf16>
    %1 = vector.shape_cast %0 : vector<1x16x16xbf16> to vector<16x16xbf16>
    %c1 = arith.constant 1 : index
    %c0_2 = arith.constant 0 : index
    %c0_3 = arith.constant 0 : index
    %2 = vector.load %arg4[%c1, %c0_2, %c0_3] : memref<2x16x16xbf16, #tpu.memory_space<vmem>>, vector<1x16x16xbf16>
    %3 = vector.shape_cast %2 : vector<1x16x16xbf16> to vector<16x16xbf16>
    %c0_4 = arith.constant 0 : index
    %c0_5 = arith.constant 0 : index
    %c0_6 = arith.constant 0 : index
    %4 = vector.load %arg5[%c0_4, %c0_5, %c0_6] : memref<2x16x16xbf16, #tpu.memory_space<vmem>>, vector<1x16x16xbf16>
    %5 = vector.shape_cast %4 : vector<1x16x16xbf16> to vector<16x16xbf16>
    %6 = vector.shape_cast %5 : vector<16x16xbf16> to vector<1x16x16xbf16>
    %7 = vector.broadcast %6 : vector<1x16x16xbf16> to vector<2x16x16xbf16>
    %c1_7 = arith.constant 1 : index
    %c0_8 = arith.constant 0 : index
    %c0_9 = arith.constant 0 : index
    %8 = vector.load %arg5[%c1_7, %c0_8, %c0_9] : memref<2x16x16xbf16, #tpu.memory_space<vmem>>, vector<1x16x16xbf16>
    %9 = vector.shape_cast %8 : vector<1x16x16xbf16> to vector<16x16xbf16>
    %10 = vector.shape_cast %9 : vector<16x16xbf16> to vector<1x16x16xbf16>
    %11 = vector.broadcast %10 : vector<1x16x16xbf16> to vector<2x16x16xbf16>
    %c0_10 = arith.constant 0 : index
    %c0_11 = arith.constant 0 : index
    %c0_12 = arith.constant 0 : index
    %12 = vector.load %arg2[%c0_10, %c0_11, %c0_12] : memref<1x32x16xf32, #tpu.memory_space<vmem>>, vector<1x32x16xf32>
    %13 = vector.shape_cast %12 : vector<1x32x16xf32> to vector<32x16xf32>
    %14 = arith.truncf %13 : vector<32x16xf32> to vector<32x16xbf16>
    %cst = arith.constant dense<0.000000e+00> : vector<32x16xf32>
    %15 = tpu.matmul %14, %1, %cst {dimension_numbers = #tpu.dot_dimension_numbers<[1], [0], [0], [1], [0, 0, 1, 1], [], []>} : vector<32x16xbf16>, vector<16x16xbf16>, vector<32x16xf32> -> vector<32x16xf32>
    %16 = vector.shape_cast %15 : vector<32x16xf32> to vector<2x16x16xf32>
    %17 = arith.truncf %16 : vector<2x16x16xf32> to vector<2x16x16xbf16>
    %cst_13 = arith.constant dense<0.000000e+00> : vector<32x16xf32>
    %18 = tpu.matmul %14, %3, %cst_13 {dimension_numbers = #tpu.dot_dimension_numbers<[1], [0], [0], [1], [0, 0, 1, 1], [], []>} : vector<32x16xbf16>, vector<16x16xbf16>, vector<32x16xf32> -> vector<32x16xf32>
    %19 = vector.shape_cast %18 : vector<32x16xf32> to vector<2x16x16xf32>
    %20 = arith.truncf %19 : vector<2x16x16xf32> to vector<2x16x16xbf16>
    "tpu.trace_start"() <{level = 10 : i32, message = "cjk,ckn->cjn"}> : () -> ()
    %cst_14 = arith.constant dense<0.000000e+00> : vector<2x16x16xf32>
    %21 = tpu.matmul %7, %17, %cst_14 {dimension_numbers = #tpu.dot_dimension_numbers<[2], [1], [1], [2], [0, 0, 0, 1, 1, 2], [0], [0]>} : vector<2x16x16xbf16>, vector<2x16x16xbf16>, vector<2x16x16xf32> -> vector<2x16x16xf32>
    %cst_15 = arith.constant dense<0.000000e+00> : vector<2x16x16xf32>
    %22 = tpu.matmul %11, %20, %cst_15 {dimension_numbers = #tpu.dot_dimension_numbers<[2], [1], [1], [2], [0, 0, 0, 1, 1, 2], [0], [0]>} : vector<2x16x16xbf16>, vector<2x16x16xbf16>, vector<2x16x16xf32> -> vector<2x16x16xf32>
    "tpu.trace_stop"() : () -> ()
    %23 = arith.subf %21, %22 : vector<2x16x16xf32>
    "tpu.trace_start"() <{level = 10 : i32, message = "cjk,ckn->cjn"}> : () -> ()
    %cst_16 = arith.constant dense<0.000000e+00> : vector<2x16x16xf32>
    %24 = tpu.matmul %7, %20, %cst_16 {dimension_numbers = #tpu.dot_dimension_numbers<[2], [1], [1], [2], [0, 0, 0, 1, 1, 2], [0], [0]>} : vector<2x16x16xbf16>, vector<2x16x16xbf16>, vector<2x16x16xf32> -> vector<2x16x16xf32>
    %cst_17 = arith.constant dense<0.000000e+00> : vector<2x16x16xf32>
    %25 = tpu.matmul %11, %17, %cst_17 {dimension_numbers = #tpu.dot_dimension_numbers<[2], [1], [1], [2], [0, 0, 0, 1, 1, 2], [0], [0]>} : vector<2x16x16xbf16>, vector<2x16x16xbf16>, vector<2x16x16xf32> -> vector<2x16x16xf32>
    "tpu.trace_stop"() : () -> ()
    %26 = arith.addf %24, %25 : vector<2x16x16xf32>
    %c0_18 = arith.constant 0 : index
    %c0_19 = arith.constant 0 : index
    %c0_20 = arith.constant 0 : index
    %c0_21 = arith.constant 0 : index
    %27 = vector.load %arg3[%c0_18, %c0_19, %c0_20, %c0_21] : memref<2x2x16x16xf32, #tpu.memory_space<vmem>>, vector<1x2x16x16xf32>
    %28 = vector.shape_cast %27 : vector<1x2x16x16xf32> to vector<2x16x16xf32>
    %c1_22 = arith.constant 1 : index
    %c0_23 = arith.constant 0 : index
    %c0_24 = arith.constant 0 : index
    %c0_25 = arith.constant 0 : index
    %29 = vector.load %arg3[%c1_22, %c0_23, %c0_24, %c0_25] : memref<2x2x16x16xf32, #tpu.memory_space<vmem>>, vector<1x2x16x16xf32>
    %30 = vector.shape_cast %29 : vector<1x2x16x16xf32> to vector<2x16x16xf32>
    %31 = arith.mulf %23, %28 : vector<2x16x16xf32>
    %32 = arith.mulf %26, %30 : vector<2x16x16xf32>
    %33 = arith.subf %31, %32 : vector<2x16x16xf32>
    %34 = arith.truncf %33 : vector<2x16x16xf32> to vector<2x16x16xbf16>
    %35 = arith.mulf %23, %30 : vector<2x16x16xf32>
    %36 = arith.mulf %26, %28 : vector<2x16x16xf32>
    %37 = arith.addf %35, %36 : vector<2x16x16xf32>
    %38 = arith.truncf %37 : vector<2x16x16xf32> to vector<2x16x16xbf16>
    "tpu.trace_start"() <{level = 10 : i32, message = "cjk,ckn->cjn"}> : () -> ()
    %cst_26 = arith.constant dense<0.000000e+00> : vector<2x16x16xf32>
    %39 = tpu.matmul %7, %34, %cst_26 {dimension_numbers = #tpu.dot_dimension_numbers<[2], [1], [1], [2], [0, 0, 0, 1, 1, 2], [0], [0]>} : vector<2x16x16xbf16>, vector<2x16x16xbf16>, vector<2x16x16xf32> -> vector<2x16x16xf32>
    %cst_27 = arith.constant dense<0.000000e+00> : vector<2x16x16xf32>
    %40 = tpu.matmul %11, %38, %cst_27 {dimension_numbers = #tpu.dot_dimension_numbers<[2], [1], [1], [2], [0, 0, 0, 1, 1, 2], [0], [0]>} : vector<2x16x16xbf16>, vector<2x16x16xbf16>, vector<2x16x16xf32> -> vector<2x16x16xf32>
    "tpu.trace_stop"() : () -> ()
    %41 = arith.addf %39, %40 : vector<2x16x16xf32>
    "tpu.trace_start"() <{level = 10 : i32, message = "cjk,ckn->cjn"}> : () -> ()
    %cst_28 = arith.constant dense<0.000000e+00> : vector<2x16x16xf32>
    %42 = tpu.matmul %7, %38, %cst_28 {dimension_numbers = #tpu.dot_dimension_numbers<[2], [1], [1], [2], [0, 0, 0, 1, 1, 2], [0], [0]>} : vector<2x16x16xbf16>, vector<2x16x16xbf16>, vector<2x16x16xf32> -> vector<2x16x16xf32>
    %cst_29 = arith.constant dense<0.000000e+00> : vector<2x16x16xf32>
    %43 = tpu.matmul %11, %34, %cst_29 {dimension_numbers = #tpu.dot_dimension_numbers<[2], [1], [1], [2], [0, 0, 0, 1, 1, 2], [0], [0]>} : vector<2x16x16xbf16>, vector<2x16x16xbf16>, vector<2x16x16xf32> -> vector<2x16x16xf32>
    "tpu.trace_stop"() : () -> ()
    %44 = arith.subf %42, %43 : vector<2x16x16xf32>
    %45 = vector.shape_cast %41 : vector<2x16x16xf32> to vector<32x16xf32>
    %46 = arith.truncf %45 : vector<32x16xf32> to vector<32x16xbf16>
    %47 = vector.shape_cast %44 : vector<2x16x16xf32> to vector<32x16xf32>
    %48 = arith.truncf %47 : vector<32x16xf32> to vector<32x16xbf16>
    %cst_30 = arith.constant dense<0.000000e+00> : vector<32x16xf32>
    %49 = tpu.matmul %46, %1, %cst_30 {dimension_numbers = #tpu.dot_dimension_numbers<[1], [0], [0], [1], [0, 0, 1, 1], [], []>} : vector<32x16xbf16>, vector<16x16xbf16>, vector<32x16xf32> -> vector<32x16xf32>
    %cst_31 = arith.constant dense<0.000000e+00> : vector<32x16xf32>
    %50 = tpu.matmul %48, %3, %cst_31 {dimension_numbers = #tpu.dot_dimension_numbers<[1], [0], [0], [1], [0, 0, 1, 1], [], []>} : vector<32x16xbf16>, vector<16x16xbf16>, vector<32x16xf32> -> vector<32x16xf32>
    %51 = arith.addf %49, %50 : vector<32x16xf32>
    %c0_32 = arith.constant 0 : index
    %c0_33 = arith.constant 0 : index
    %c0_34 = arith.constant 0 : index
    %52 = vector.load %arg6[%c0_32, %c0_33, %c0_34] : memref<1x32x16xf32, #tpu.memory_space<vmem>>, vector<1x32x16xf32>
    %53 = vector.shape_cast %52 : vector<1x32x16xf32> to vector<32x16xf32>
    %54 = vector.shape_cast %51 : vector<32x16xf32> to vector<1x32x16xf32>
    tpu.vector_store %arg6[%c0_32, %c0_33, %c0_34], %54 {strides = array<i32>} : memref<1x32x16xf32, #tpu.memory_space<vmem>>, vector<1x32x16xf32>,
    return
  }
  func.func @transform_0(%arg0: i32, %arg1: i32) -> (i32, i32, i32) {
    %c2_i32 = arith.constant 2 : i32
    %0 = arith.addi %arg0, %c2_i32 : i32
    %c1_i32 = arith.constant 1 : i32
    %1 = arith.subi %0, %c1_i32 : i32
    %c2_i32_0 = arith.constant 2 : i32
    %c0_i32 = arith.constant 0 : i32
    %2 = arith.cmpi eq, %c2_i32_0, %c0_i32 : i32
    %c1_i32_1 = arith.constant 1 : i32
    %3 = arith.select %2, %c1_i32_1, %c2_i32_0 : i32
    %4 = arith.remsi %1, %3 : i32
    %c0_i32_2 = arith.constant 0 : i32
    %5 = arith.cmpi ne, %4, %c0_i32_2 : i32
    %c0_i32_3 = arith.constant 0 : i32
    %6 = arith.cmpi slt, %4, %c0_i32_3 : i32
    %c0_i32_4 = arith.constant 0 : i32
    %7 = arith.cmpi slt, %3, %c0_i32_4 : i32
    %8 = arith.xori %6, %7 : i1
    %9 = arith.andi %8, %5 : i1
    %10 = arith.addi %4, %3 : i32
    %11 = arith.select %9, %10, %4 : i32
    %c2_i32_5 = arith.constant 2 : i32
    %12 = arith.addi %arg1, %c2_i32_5 : i32
    %c1_i32_6 = arith.constant 1 : i32
    %13 = arith.subi %12, %c1_i32_6 : i32
    %c2_i32_7 = arith.constant 2 : i32
    %c0_i32_8 = arith.constant 0 : i32
    %14 = arith.cmpi eq, %c2_i32_7, %c0_i32_8 : i32
    %c1_i32_9 = arith.constant 1 : i32
    %15 = arith.select %14, %c1_i32_9, %c2_i32_7 : i32
    %16 = arith.remsi %13, %15 : i32
    %c0_i32_10 = arith.constant 0 : i32
    %17 = arith.cmpi ne, %16, %c0_i32_10 : i32
    %c0_i32_11 = arith.constant 0 : i32
    %18 = arith.cmpi slt, %16, %c0_i32_11 : i32
    %c0_i32_12 = arith.constant 0 : i32
    %19 = arith.cmpi slt, %15, %c0_i32_12 : i32
    %20 = arith.xori %18, %19 : i1
    %21 = arith.andi %20, %17 : i1
    %22 = arith.addi %16, %15 : i32
    %23 = arith.select %21, %22, %16 : i32
    %c0_i32_13 = arith.constant 0 : i32
    %c0_i32_14 = arith.constant 0 : i32
    return %11, %23, %c0_i32_13 : i32, i32, i32
  }
  func.func @transform_1(%arg0: i32, %arg1: i32) -> (i32, i32, i32, i32) {
    %c0_i32 = arith.constant 0 : i32
    %c0_i32_0 = arith.constant 0 : i32
    %c0_i32_1 = arith.constant 0 : i32
    %c0_i32_2 = arith.constant 0 : i32
    return %c0_i32, %arg1, %c0_i32_0, %c0_i32_1 : i32, i32, i32, i32
  }
  func.func @transform_2(%arg0: i32, %arg1: i32) -> (i32, i32, i32) {
    %c0_i32 = arith.constant 0 : i32
    %c0_i32_0 = arith.constant 0 : i32
    %c0_i32_1 = arith.constant 0 : i32
    %c0_i32_2 = arith.constant 0 : i32
    return %c0_i32, %c0_i32_0, %c0_i32_1 : i32, i32, i32
  }
  func.func @transform_3(%arg0: i32, %arg1: i32) -> (i32, i32, i32) {
    %c0_i32 = arith.constant 0 : i32
    %c0_i32_0 = arith.constant 0 : i32
    %c0_i32_1 = arith.constant 0 : i32
    %c0_i32_2 = arith.constant 0 : i32
    return %c0_i32, %c0_i32_0, %c0_i32_1 : i32, i32, i32
  }
  func.func @transform_4(%arg0: i32, %arg1: i32) -> (i32, i32, i32) {
    %c0_i32 = arith.constant 0 : i32
    %c0_i32_0 = arith.constant 0 : i32
    return %arg0, %arg1, %c0_i32 : i32, i32, i32
  }
}

</mosaic_0001>

<llo_original>
// kernel: adaptive_global_filter.1
$region0: #{adaptive_global_filter.1}
  #allocation0 [shape = 'u32[]', space=smem, size = 0x4, offset = 0x4, fixed_abs, tag = 'smem constant byte address 0x4 - core index']
  #allocation1 [shape = 'u32[144,128]{1,0:T(1,128)}', space=vmem, size = 0x12000, scoped, tag = 'internal scratch']
  %s0 = inlined_call_operand.vmem [shape: f32[2,64,16], index: 0, kind: input, shape index: {}]
  %s1 = inlined_call_operand.vmem [shape: f32[2,4,16,16], index: 1, kind: input, shape index: {}]
  %s2 = inlined_call_operand.vmem [shape: bf16[2,16,16], index: 2, kind: input, shape index: {}, may-alias: {2,3}]
  %s3 = inlined_call_operand.vmem [shape: bf16[2,16,16], index: 3, kind: input, shape index: {}, may-alias: {2,3}]
  %s4 = inlined_call_operand.hbm [shape: f32[2,64,16], index: 4, kind: output, shape index: {}]
  %s5 = sld [smem:[#allocation0]]
  $region87: #{adaptive_global_filter.1} parent=0
    _
  %s7 = ssub.s32 1, %s5
  %s8 = scalar_select 0, %s7, %s5
  $region1: #{adaptive_global_filter.1} parent=0
    #allocation2 [shape = 'u8[65536]{0}', space=vmem, size = 0x10000, scoped, tag = 'input window, operand 1']
    #allocation3 [shape = 'u8[32768]{0}', space=vmem, size = 0x8000, scoped, tag = 'output window, operand 0']
    #allocation4 [shape = 's32[2]{0}', space=sflag, size = 0x8, scoped, tag = 'scoped memory for adaptive_global_filter.1']
    %9 = vsyncpa [#allocation4], 0
    %s10 = scalar_lea.sflag [#allocation4], 1
    %11 = vsyncpa %s10, 0
    loop: start=0, step=1, limit=6
    $region2: #{adaptive_global_filter.1} parent=1 // loop_pre_header
      _
    $region3: #{adaptive_global_filter.1} parent=1 // loop_header
      %s13 = sphi 0, %s17
      %p14 = scmp.ge.s32.totalorder %s13, 6
      %s20 = sphi 0, %s32
      %s21 = sphi 0, %s28
      %s22 = sphi 0, %s20
      %s23 = sphi 0, %s21
      %s24 = sphi 0, %s22
      %s25 = sphi 0, %s23
      %s89 = sphi 0, %s91
      %s92 = sphi 0, %s89
      %s93 = sphi 0, %s92
      %s109 = sphi 0, %s93
      %s115 = sphi 0, %s117
      %s118 = sphi 0, %s115
      %s119 = sphi 0, %s118
      %s135 = sphi 0, %s119
      %s139 = sphi 0, %s139
      %s141 = sphi 0, %s139
      %s142 = sphi 0, %s141
      %s156 = sphi 0, %s142
      %s160 = sphi 0, %s160
      %s162 = sphi 0, %s160
      %s163 = sphi 0, %s162
      %s177 = sphi 0, %s163
      %s185 = sphi 0, %s187
      %s188 = sphi 0, %s185
      %s189 = sphi 0, %s188
      %s205 = sphi 0, %s189
    $region4: #{adaptive_global_filter.1} parent=1 // loop_header_branch
      %16 = sbr.rel (%p14) target = $region8
    $region5: #{adaptive_global_filter.1} parent=1 // loop_body
      %s18 = ssub.s32 %s13, 1
      %s19 = ssub.s32 %s13, 2
      %s26 = sadd.s32 1, %s21
      %p27 = scmp.ge.s32.totalorder %s26, 2
      %s28 = scalar_select %p27, 0, %s26
      %s29 = sadd.s32 1, %s20
      %s30 = scalar_select %p27, %s29, %s20
      %p31 = scmp.ge.s32.totalorder %s30, 2
      %s32 = scalar_select %p31, 0, %s30
      %s33 = sadd.s32 %s20, 1
      %p34 = scmp.lt.s32.totalorder %s33, 0
      %s35 = ssub.s32 0, %s33
      %s36 = scalar_select %p34, %s35, %s33
      %s37 = sand.u32 %s36, 1
      %s38 = ssub.s32 0, %s37
      %s39 = scalar_select %p34, %s38, %s37
      %p40 = scmp.ne.s32.totalorder %s39, 0
      %p41 = scmp.lt.s32.totalorder %s39, 0
      %p42 = pnand %p41, %p40
      %p43 = pneg %p42
      %s44 = sadd.s32 %s39, 2
      %s45 = scalar_select %p43, %s44, %s39
      %s46 = sadd.s32 %s21, 1
      %p47 = scmp.lt.s32.totalorder %s46, 0
      %s48 = ssub.s32 0, %s46
      %s49 = scalar_select %p47, %s48, %s46
      %s50 = sand.u32 %s49, 1
      %s51 = ssub.s32 0, %s50
      %s52 = scalar_select %p47, %s51, %s50
      %p53 = scmp.ne.s32.totalorder %s52, 0
      %p54 = scmp.lt.s32.totalorder %s52, 0
      %p55 = pnand %p54, %p53
      %p56 = pneg %p55
      %s57 = sadd.s32 %s52, 2
      %s58 = scalar_select %p56, %s57, %s52
      %s59 = sadd.s32 %s32, 1
      %p60 = scmp.lt.s32.totalorder %s59, 0
      %s61 = ssub.s32 0, %s59
      %s62 = scalar_select %p60, %s61, %s59
      %s63 = sand.u32 %s62, 1
      %s64 = ssub.s32 0, %s63
      %s65 = scalar_select %p60, %s64, %s63
      %p66 = scmp.ne.s32.totalorder %s65, 0
      %p67 = scmp.lt.s32.totalorder %s65, 0
      %p68 = pnand %p67, %p66
      %p69 = pneg %p68
      %s70 = sadd.s32 %s65, 2
      %s71 = scalar_select %p69, %s70, %s65
      %s72 = sadd.s32 %s28, 1
      %p73 = scmp.lt.s32.totalorder %s72, 0
      %s74 = ssub.s32 0, %s72
      %s75 = scalar_select %p73, %s74, %s72
      %s76 = sand.u32 %s75, 1
      %s77 = ssub.s32 0, %s76
      %s78 = scalar_select %p73, %s77, %s76
      %p79 = scmp.ne.s32.totalorder %s78, 0
      %p80 = scmp.lt.s32.totalorder %s78, 0
      %p81 = pnand %p80, %p79
      %p82 = pneg %p81
      %s83 = sadd.s32 %s78, 2
      %s84 = scalar_select %p82, %s83, %s78
      %s85 = ssub.s32 %s45, %s71
      %s86 = ssub.s32 %s58, %s84
      %s87 = sor.u32 %s85, %s86
      %p88 = scmp.eq.s32.totalorder %s87, 0
      %s90 = sadd.s32 %s89, 1
      %s91 = scalar_select %p88, %s89, %s90
      %p94 = pneg %p88
      %p95 = scmp.eq.s32.totalorder %s13, 3
      %p96 = por %p94, %p95
      %p97 = scmp.ne.s32.totalorder %s89, %s92
      %p98 = scmp.eq.s32.totalorder %s13, 0
      %p99 = por %p97, %p98
      %p100 = scmp.ne.s32.totalorder %s89, %s92
      %p101 = scmp.eq.s32.totalorder %s18, 3
      %p102 = por %p100, %p101
      %p103 = scmp.ne.s32.totalorder %s92, %s93
      %p104 = scmp.eq.s32.totalorder %s18, 0
      %p105 = por %p103, %p104
      %p106 = scmp.ne.s32.totalorder %s92, %s93
      %p107 = scmp.eq.s32.totalorder %s19, 3
      %p108 = por %p106, %p107
      %p110 = scmp.ne.s32.totalorder %s93, %s109
      %p111 = scmp.eq.s32.totalorder %s19, 0
      %p112 = por %p110, %p111
      %s113 = ssub.s32 %s21, %s28
      %p114 = scmp.eq.s32.totalorder %s113, 0
      %s116 = sadd.s32 %s115, 1
      %s117 = scalar_select %p114, %s115, %s116
      %p120 = pneg %p114
      %p121 = scmp.eq.s32.totalorder %s13, 3
      %p122 = por %p120, %p121
      %p123 = scmp.ne.s32.totalorder %s115, %s118
      %p124 = scmp.eq.s32.totalorder %s13, 0
      %p125 = por %p123, %p124
      %p126 = scmp.ne.s32.totalorder %s115, %s118
      %p127 = scmp.eq.s32.totalorder %s18, 3
      %p128 = por %p126, %p127
      %p129 = scmp.ne.s32.totalorder %s118, %s119
      %p130 = scmp.eq.s32.totalorder %s18, 0
      %p131 = por %p129, %p130
      %p132 = scmp.ne.s32.totalorder %s118, %s119
      %p133 = scmp.eq.s32.totalorder %s19, 3
      %p134 = por %p132, %p133
      %p136 = scmp.ne.s32.totalorder %s119, %s135
      %p137 = scmp.eq.s32.totalorder %s19, 0
      %p138 = por %p136, %p137
      %s140 = sadd.s32 %s139, 1
      %p143 = scmp.eq.s32.totalorder %s13, 3
      %p144 = scmp.ne.s32.totalorder %s139, %s141
      %p145 = scmp.eq.s32.totalorder %s13, 0
      %p146 = por %p144, %p145
      %p147 = scmp.ne.s32.totalorder %s139, %s141
      %p148 = scmp.eq.s32.totalorder %s18, 3
      %p149 = por %p147, %p148
      %p150 = scmp.ne.s32.totalorder %s141, %s142
      %p151 = scmp.eq.s32.totalorder %s18, 0
      %p152 = por %p150, %p151
      %p153 = scmp.ne.s32.totalorder %s141, %s142
      %p154 = scmp.eq.s32.totalorder %s19, 3
      %p155 = por %p153, %p154
      %p157 = scmp.ne.s32.totalorder %s142, %s156
      %p158 = scmp.eq.s32.totalorder %s19, 0
      %p159 = por %p157, %p158
      %s161 = sadd.s32 %s160, 1
      %p164 = scmp.eq.s32.totalorder %s13, 3
      %p165 = scmp.ne.s32.totalorder %s160, %s162
      %p166 = scmp.eq.s32.totalorder %s13, 0
      %p167 = por %p165, %p166
      %p168 = scmp.ne.s32.totalorder %s160, %s162
      %p169 = scmp.eq.s32.totalorder %s18, 3
      %p170 = por %p168, %p169
      %p171 = scmp.ne.s32.totalorder %s162, %s163
      %p172 = scmp.eq.s32.totalorder %s18, 0
      %p173 = por %p171, %p172
      %p174 = scmp.ne.s32.totalorder %s162, %s163
      %p175 = scmp.eq.s32.totalorder %s19, 3
      %p176 = por %p174, %p175
      %p178 = scmp.ne.s32.totalorder %s163, %s177
      %p179 = scmp.eq.s32.totalorder %s19, 0
      %p180 = por %p178, %p179
      %s181 = ssub.s32 %s20, %s32
      %s182 = ssub.s32 %s21, %s28
      %s183 = sor.u32 %s181, %s182
      %p184 = scmp.eq.s32.totalorder %s183, 0
      %s186 = sadd.s32 %s185, 1
      %s187 = scalar_select %p184, %s185, %s186
      %p190 = pneg %p184
      %p191 = scmp.eq.s32.totalorder %s13, 3
      %p192 = por %p190, %p191
      %p193 = scmp.ne.s32.totalorder %s185, %s188
      %p194 = scmp.eq.s32.totalorder %s13, 0
      %p195 = por %p193, %p194
      %p196 = scmp.ne.s32.totalorder %s185, %s188
      %p197 = scmp.eq.s32.totalorder %s18, 3
      %p198 = por %p196, %p197
      %p199 = scmp.ne.s32.totalorder %s188, %s189
      %p200 = scmp.eq.s32.totalorder %s18, 0
      %p201 = por %p199, %p200
      %p202 = scmp.ne.s32.totalorder %s188, %s189
      %p203 = scmp.eq.s32.totalorder %s19, 3
      %p204 = por %p202, %p203
      %p206 = scmp.ne.s32.totalorder %s189, %s205
      %p207 = scmp.eq.s32.totalorder %s19, 0
      %p208 = por %p206, %p207
      %p209 = scmp.le.s32.totalorder 1, %s13
      %p210 = scmp.lt.s32.totalorder %s13, 5
      %p211 = pnand %p209, %p210
      %p212 = pneg %p211
      // Predicated region
      $region9: #{adaptive_global_filter.1} parent=5 // pred_check
        _
      $region10: #{adaptive_global_filter.1} parent=5 // pred_check_branch
        %214 = sbr.rel (%p211) target = $region12
      $region11: #{adaptive_global_filter.1} parent=5 // pred_region
        %s215 = ssub.s32 %s13, 1
        // Predicated region
        $region13: #{adaptive_global_filter.1} parent=11 // pred_check
          %p216 = pneg %p152
        $region14: #{adaptive_global_filter.1} parent=11 // pred_check_branch
          %218 = sbr.rel (%p216) target = $region16
        $region15: #{adaptive_global_filter.1} parent=11 // pred_region
          _
        $region16: #{adaptive_global_filter.1} parent=11 // pred_fallthru
          _
        // Predicated region
        $region17: #{adaptive_global_filter.1} parent=11 // pred_check
          %p219 = pneg %p173
        $region18: #{adaptive_global_filter.1} parent=11 // pred_check_branch
          %221 = sbr.rel (%p219) target = $region20
        $region19: #{adaptive_global_filter.1} parent=11 // pred_region
          _
        $region20: #{adaptive_global_filter.1} parent=11 // pred_fallthru
          _
      $region12: #{adaptive_global_filter.1} parent=5 // pred_fallthru
        _
      %p222 = scmp.lt.s32.totalorder %s13, 4
      // Predicated region
      $region21: #{adaptive_global_filter.1} parent=5 // pred_check
        %p223 = pneg %p222
      $region22: #{adaptive_global_filter.1} parent=5 // pred_check_branch
        %225 = sbr.rel (%p223) target = $region24
      $region23: #{adaptive_global_filter.1} parent=5 // pred_region
        // Predicated region
        $region25: #{adaptive_global_filter.1} parent=23 // pred_check
          %p226 = pneg %p99
        $region26: #{adaptive_global_filter.1} parent=23 // pred_check_branch
          %228 = sbr.rel (%p226) target = $region28
        $region27: #{adaptive_global_filter.1} parent=23 // pred_region
          %s229 = sadd.s32 %s20, 1
          %p230 = scmp.lt.s32.totalorder %s229, 0
          %s231 = ssub.s32 0, %s229
          %s232 = scalar_select %p230, %s231, %s229
          %s233 = sand.u32 %s232, 1
          %s234 = ssub.s32 0, %s233
          %s235 = scalar_select %p230, %s234, %s233
          %p236 = scmp.ne.s32.totalorder %s235, 0
          %p237 = scmp.lt.s32.totalorder %s235, 0
          %p238 = pnand %p237, %p236
          %p239 = pneg %p238
          %s240 = sadd.s32 %s235, 2
          %s241 = scalar_select %p239, %s240, %s235
          %s242 = sadd.s32 %s21, 1
          %p243 = scmp.lt.s32.totalorder %s242, 0
          %s244 = ssub.s32 0, %s242
          %s245 = scalar_select %p243, %s244, %s242
          %s246 = sand.u32 %s245, 1
          %s247 = ssub.s32 0, %s246
          %s248 = scalar_select %p243, %s247, %s246
          %p249 = scmp.ne.s32.totalorder %s248, 0
          %p250 = scmp.lt.s32.totalorder %s248, 0
          %p251 = pnand %p250, %p249
          %p252 = pneg %p251
          %s253 = sadd.s32 %s248, 2
          %s254 = scalar_select %p252, %s253, %s248
          %s255 = smul.u32 4, %s254
          %p256 = scmp.lt.s32.totalorder %s241, 1
          %s257 = scalar_select %p256, %s241, 1
          %p258 = scmp.lt.s32.totalorder %s255, 7
          %s259 = scalar_select %p258, %s255, 7
          %s260 = smul.addr %s257, 8
          %s261 = sadd.s32 %s259, %s260
          %s262 = smul.addr %s261, 8
          %s263 = scalar_lea.vmem %s0, %s262
          %s264 = sadd.s32 %s20, 1
          %p265 = scmp.lt.s32.totalorder %s264, 0
          %s266 = ssub.s32 0, %s264
          %s267 = scalar_select %p265, %s266, %s264
          %s268 = sand.u32 %s267, 1
          %s269 = ssub.s32 0, %s268
          %s270 = scalar_select %p265, %s269, %s268
          %p271 = scmp.ne.s32.totalorder %s270, 0
          %p272 = scmp.lt.s32.totalorder %s270, 0
          %p273 = pnand %p272, %p271
          %p274 = pneg %p273
          %s275 = sadd.s32 %s270, 2
          %s276 = scalar_select %p274, %s275, %s270
          %s277 = sadd.s32 %s21, 1
          %p278 = scmp.lt.s32.totalorder %s277, 0
          %s279 = ssub.s32 0, %s277
          %s280 = scalar_select %p278, %s279, %s277
          %s281 = sand.u32 %s280, 1
          %s282 = ssub.s32 0, %s281
          %s283 = scalar_select %p278, %s282, %s281
          %p284 = scmp.ne.s32.totalorder %s283, 0
          %p285 = scmp.lt.s32.totalorder %s283, 0
          %p286 = pnand %p285, %p284
          %p287 = pneg %p286
          %s288 = sadd.s32 %s283, 2
          %s289 = scalar_select %p287, %s288, %s283
          %s290 = smul.u32 4, %s289
        $region28: #{adaptive_global_filter.1} parent=23 // pred_fallthru
          _
        // Predicated region
        $region29: #{adaptive_global_filter.1} parent=23 // pred_check
          %p291 = pneg %p125
        $region30: #{adaptive_global_filter.1} parent=23 // pred_check_branch
          %293 = sbr.rel (%p291) target = $region32
        $region31: #{adaptive_global_filter.1} parent=23 // pred_region
          %s294 = sand.u32 %s115, 1
          %s295 = sand.u32 %s115, 1
          %s296 = smul.addr %s295, 64
          %s297 = scalar_lea.vmem [#allocation2], %s296
          %s298 = smul.u32 2, %s21
          %s299 = smul.addr %s298, 2
          %s300 = smul.addr %s299, 8
          %s301 = scalar_lea.vmem %s1, %s300
          // Predicated region
          $region33: #{adaptive_global_filter.1} parent=31 // pred_check
            _
          $region34: #{adaptive_global_filter.1} parent=31 // pred_check_branch
            %303 = sbr.rel (0) target = $region36
          $region35: #{adaptive_global_filter.1} parent=31 // pred_region
            // Predicated region
            $region37: #{adaptive_global_filter.1} parent=35 // pred_check
              _
            $region38: #{adaptive_global_filter.1} parent=35 // pred_check_branch
              %305 = sbr.rel (0) target = $region40
            $region39: #{adaptive_global_filter.1} parent=35 // pred_region
              // Predicated region
              $region52: #{adaptive_global_filter.1} parent=39 // pred_check
                _
              $region53: #{adaptive_global_filter.1} parent=39 // pred_check_branch
                %334 = sbr.rel (0) target = $region55
              $region54: #{adaptive_global_filter.1} parent=39 // pred_region
                loop: start=0, step=1, limit=1
                $region56: #{adaptive_global_filter.1} parent=54 // loop_pre_header
                  _
                $region57: #{adaptive_global_filter.1} parent=54 // loop_header
                  %s336 = sphi 0, %s340
                  %p337 = scmp.ge.s32.totalorder %s336, 1
                  %s341 = sphi %s301, %s301
                  %s342 = sphi %s297, %s297
                $region58: #{adaptive_global_filter.1} parent=54 // loop_header_branch
                  %339 = sbr.rel (%p337) target = $region62
                $region59: #{adaptive_global_filter.1} parent=54 // loop_body
                  %v343 = vld [vmem:[%s341] sm:$0xff]
                  %344 = vst [vmem:[%s342] sm:$0xff] %v343
                  %v345 = vld [vmem:[%s341 + $0x8] sm:$0xff]
                  %346 = vst [vmem:[%s342 + $0x8] sm:$0xff] %v345
                  %v347 = vld [vmem:[%s341 + $0x10] sm:$0xff]
                  %348 = vst [vmem:[%s342 + $0x10] sm:$0xff] %v347
                  %v349 = vld [vmem:[%s341 + $0x18] sm:$0xff]
                  %350 = vst [vmem:[%s342 + $0x18] sm:$0xff] %v349
                  %v351 = vld [vmem:[%s341 + $0x40] sm:$0xff]
                  %352 = vst [vmem:[%s342 + $0x20] sm:$0xff] %v351
                  %v353 = vld [vmem:[%s341 + $0x48] sm:$0xff]
                  %354 = vst [vmem:[%s342 + $0x28] sm:$0xff] %v353
                  %v355 = vld [vmem:[%s341 + $0x50] sm:$0xff]
                  %356 = vst [vmem:[%s342 + $0x30] sm:$0xff] %v355
                  %v357 = vld [vmem:[%s341 + $0x58] sm:$0xff]
                  %358 = vst [vmem:[%s342 + $0x38] sm:$0xff] %v357
                $region60: #{adaptive_global_filter.1} parent=54 // loop_footer
                  %s340 = sadd.s32 1, %s336
                $region61: #{adaptive_global_filter.1} parent=54 // loop_footer_branch
                  %335 = sbr.rel target = $region57
                $region62: #{adaptive_global_filter.1} parent=54 // loop_exit
                  _
              $region55: #{adaptive_global_filter.1} parent=39 // pred_fallthru
                _
              // Predicated region
              $region63: #{adaptive_global_filter.1} parent=39 // pred_check
                _
              $region64: #{adaptive_global_filter.1} parent=39 // pred_check_branch
                %360 = sbr.rel target = $region66
              $region65: #{adaptive_global_filter.1} parent=39 // pred_region
                _
              $region66: #{adaptive_global_filter.1} parent=39 // pred_fallthru
                _
            $region40: #{adaptive_global_filter.1} parent=35 // pred_fallthru
              _
            // Predicated region
            $region41: #{adaptive_global_filter.1} parent=35 // pred_check
              _
            $region42: #{adaptive_global_filter.1} parent=35 // pred_check_branch
              %307 = sbr.rel target = $region44
            $region43: #{adaptive_global_filter.1} parent=35 // pred_region
              loop: start=0, step=1, limit=1
              $region45: #{adaptive_global_filter.1} parent=43 // loop_pre_header
                _
              $region46: #{adaptive_global_filter.1} parent=43 // loop_header
                %s310 = sphi 0, %s314
                %p311 = scmp.ge.s32.totalorder %s310, 1
                %s315 = sphi %s301, %s301
                %s316 = sphi %s297, %s297
              $region47: #{adaptive_global_filter.1} parent=43 // loop_header_branch
                %313 = sbr.rel (%p311) target = $region51
              $region48: #{adaptive_global_filter.1} parent=43 // loop_body
                %v317 = vld [vmem:[%s315] sm:$0xff]
                %318 = vst [vmem:[%s316] sm:$0xff] %v317
                %v319 = vld [vmem:[%s315 + $0x8] sm:$0xff]
                %320 = vst [vmem:[%s316 + $0x8] sm:$0xff] %v319
                %v321 = vld [vmem:[%s315 + $0x10] sm:$0xff]
                %322 = vst [vmem:[%s316 + $0x10] sm:$0xff] %v321
                %v323 = vld [vmem:[%s315 + $0x18] sm:$0xff]
                %324 = vst [vmem:[%s316 + $0x18] sm:$0xff] %v323
                %v325 = vld [vmem:[%s315 + $0x40] sm:$0xff]
                %326 = vst [vmem:[%s316 + $0x20] sm:$0xff] %v325
                %v327 = vld [vmem:[%s315 + $0x48] sm:$0xff]
                %328 = vst [vmem:[%s316 + $0x28] sm:$0xff] %v327
                %v329 = vld [vmem:[%s315 + $0x50] sm:$0xff]
                %330 = vst [vmem:[%s316 + $0x30] sm:$0xff] %v329
                %v331 = vld [vmem:[%s315 + $0x58] sm:$0xff]
                %332 = vst [vmem:[%s316 + $0x38] sm:$0xff] %v331
              $region49: #{adaptive_global_filter.1} parent=43 // loop_footer
                %s314 = sadd.s32 1, %s310
              $region50: #{adaptive_global_filter.1} parent=43 // loop_footer_branch
                %309 = sbr.rel target = $region46
              $region51: #{adaptive_global_filter.1} parent=43 // loop_exit
                _
            $region44: #{adaptive_global_filter.1} parent=35 // pred_fallthru
              _
          $region36: #{adaptive_global_filter.1} parent=31 // pred_fallthru
            _
          %361 = vnop
        $region32: #{adaptive_global_filter.1} parent=23 // pred_fallthru
          _
      $region24: #{adaptive_global_filter.1} parent=5 // pred_fallthru
        _
      %p362 = scmp.le.s32.totalorder 1, %s13
      %p363 = scmp.lt.s32.totalorder %s13, 5
      %p364 = pnand %p362, %p363
      %p365 = pneg %p364
      // Predicated region
      $region67: #{adaptive_global_filter.1} parent=5 // pred_check
        _
      $region68: #{adaptive_global_filter.1} parent=5 // pred_check_branch
        %367 = sbr.rel (%p364) target = $region70
      $region69: #{adaptive_global_filter.1} parent=5 // pred_region
        %s368 = ssub.s32 %s13, 1
        %s369 = sand.u32 %s118, 1
        %s370 = sand.u32 %s118, 1
        %s371 = smul.addr %s370, 64
        %s372 = scalar_lea.vmem [#allocation2], %s371
        // Predicated region
        $region71: #{adaptive_global_filter.1} parent=69 // pred_check
          %p373 = pneg %p131
        $region72: #{adaptive_global_filter.1} parent=69 // pred_check_branch
          %375 = sbr.rel (%p373) target = $region74
        $region73: #{adaptive_global_filter.1} parent=69 // pred_region
          _
        $region74: #{adaptive_global_filter.1} parent=69 // pred_fallthru
          _
        %s376 = sadd.s32 %s22, 1
        %p377 = scmp.lt.s32.totalorder %s376, 0
        %s378 = ssub.s32 0, %s376
        %s379 = scalar_select %p377, %s378, %s376
        %s380 = sand.u32 %s379, 1
        %s381 = ssub.s32 0, %s380
        %s382 = scalar_select %p377, %s381, %s380
        %p383 = scmp.ne.s32.totalorder %s382, 0
        %p384 = scmp.lt.s32.totalorder %s382, 0
        %p385 = pnand %p384, %p383
        %p386 = pneg %p385
        %s387 = sadd.s32 %s382, 2
        %s388 = scalar_select %p386, %s387, %s382
        %s389 = sadd.s32 %s23, 1
        %p390 = scmp.lt.s32.totalorder %s389, 0
        %s391 = ssub.s32 0, %s389
        %s392 = scalar_select %p390, %s391, %s389
        %s393 = sand.u32 %s392, 1
        %s394 = ssub.s32 0, %s393
        %s395 = scalar_select %p390, %s394, %s393
        %p396 = scmp.ne.s32.totalorder %s395, 0
        %p397 = scmp.lt.s32.totalorder %s395, 0
        %p398 = pnand %p397, %p396
        %p399 = pneg %p398
        %s400 = sadd.s32 %s395, 2
        %s401 = scalar_select %p399, %s400, %s395
        %s402 = smul.u32 4, %s401
        %p403 = scmp.lt.s32.totalorder %s388, 1
        %s404 = scalar_select %p403, %s388, 1
        %p405 = scmp.lt.s32.totalorder %s402, 7
        %s406 = scalar_select %p405, %s402, 7
        %s407 = smul.addr %s404, 8
        %s408 = sadd.s32 %s406, %s407
        %s409 = smul.addr %s408, 8
        %s410 = scalar_lea.vmem %s0, %s409
        %p411 = pneg %p105
        %p412 = pneg %p102
        %s413 = sand.u32 %s118, 1
        %s414 = sand.u32 %s118, 1
        %s415 = smul.addr %s414, 64
        %s416 = scalar_lea.vmem [#allocation2], %s415
        %p417 = pneg %p131
        %p418 = pneg %p128
        %p419 = pneg %p152
        %p420 = pneg %p149
        %p421 = pneg %p173
        %p422 = pneg %p170
        %p423 = pneg %p201
        %p424 = pneg %p198
        %s425 = sand.u32 %s188, 1
        %s426 = scalar_lea.sflag [#allocation4], %s425
        %s427 = sand.u32 %s188, 1
        %s428 = smul.addr %s427, 32
        %s429 = scalar_lea.vmem [#allocation3], %s428
        %s430 = sadd.s32 %s22, 1
        %p431 = scmp.lt.s32.totalorder %s430, 0
        %s432 = ssub.s32 0, %s430
        %s433 = scalar_select %p431, %s432, %s430
        %s434 = sand.u32 %s433, 1
        %s435 = ssub.s32 0, %s434
        %s436 = scalar_select %p431, %s435, %s434
        %p437 = scmp.ne.s32.totalorder %s436, 0
        %p438 = scmp.lt.s32.totalorder %s436, 0
        %p439 = pnand %p438, %p437
        %p440 = pneg %p439
        %s441 = sadd.s32 %s436, 2
        %s442 = scalar_select %p440, %s441, %s436
        %s443 = sadd.s32 %s23, 1
        %p444 = scmp.lt.s32.totalorder %s443, 0
        %s445 = ssub.s32 0, %s443
        %s446 = scalar_select %p444, %s445, %s443
        %s447 = sand.u32 %s446, 1
        %s448 = ssub.s32 0, %s447
        %s449 = scalar_select %p444, %s448, %s447
        %p450 = scmp.ne.s32.totalorder %s449, 0
        %p451 = scmp.lt.s32.totalorder %s449, 0
        %p452 = pnand %p451, %p450
        %p453 = pneg %p452
        %s454 = sadd.s32 %s449, 2
        %s455 = scalar_select %p453, %s454, %s449
        %s456 = smul.u32 4, %s455
        %p457 = scmp.lt.s32.totalorder %s442, 1
        %s458 = scalar_select %p457, %s442, 1
        %p459 = scmp.lt.s32.totalorder %s456, 7
        %s460 = scalar_select %p459, %s456, 7
        %s461 = smul.addr %s458, 8
        %s462 = sadd.s32 %s460, %s461
        %s463 = smul.addr %s462, 8
        %s464 = scalar_lea.vmem %s0, %s463
        %s465 = sadd.s32 %s22, 1
        %p466 = scmp.lt.s32.totalorder %s465, 0
        %s467 = ssub.s32 0, %s465
        %s468 = scalar_select %p466, %s467, %s465
        %s469 = sand.u32 %s468, 1
        %s470 = ssub.s32 0, %s469
        %s471 = scalar_select %p466, %s470, %s469
        %p472 = scmp.ne.s32.totalorder %s471, 0
        %p473 = scmp.lt.s32.totalorder %s471, 0
        %p474 = pnand %p473, %p472
        %p475 = pneg %p474
        %s476 = sadd.s32 %s471, 2
        %s477 = scalar_select %p475, %s476, %s471
        %s478 = sadd.s32 %s23, 1
        %p479 = scmp.lt.s32.totalorder %s478, 0
        %s480 = ssub.s32 0, %s478
        %s481 = scalar_select %p479, %s480, %s478
        %s482 = sand.u32 %s481, 1
        %s483 = ssub.s32 0, %s482
        %s484 = scalar_select %p479, %s483, %s482
        %p485 = scmp.ne.s32.totalorder %s484, 0
        %p486 = scmp.lt.s32.totalorder %s484, 0
        %p487 = pnand %p486, %p485
        %p488 = pneg %p487
        %s489 = sadd.s32 %s484, 2
        %s490 = scalar_select %p488, %s489, %s484
        %s491 = smul.u32 4, %s490
        %s492 = smul.u32 2, %s23
        %s493 = smul.u32 4, %s23
        %v495 = vld [vmem:[%s2] sm:$0xf]
        %v496 = vld [vmem:[%s2 + $0x4] sm:$0xf]
        %s497 = scalar_lea.vmem %s2, 8
        %v498 = vld [vmem:[%s497] sm:$0xf]
        %v499 = vld [vmem:[%s497 + $0x4] sm:$0xf]
        %v500 = vld [vmem:[%s3] sm:$0xf]
        %v501 = vld [vmem:[%s3 + $0x4] sm:$0xf]
        %s502 = scalar_lea.vmem %s3, 8
        %v503 = vld [vmem:[%s502] sm:$0xf]
        %v504 = vld [vmem:[%s502 + $0x4] sm:$0xf]
        %v505 = vld [vmem:[%s464] sm:$0xff]
        %v506 = vld [vmem:[%s464 + $0x8] sm:$0xff]
        %v507 = vld [vmem:[%s464 + $0x10] sm:$0xff]
        %v508 = vld [vmem:[%s464 + $0x18] sm:$0xff]
        %v509 = vpack.c.bf16 %v506, %v505
        %v510 = vpack.c.bf16 %v508, %v507
        %v513 = vunpack.c.l.b16 %v495
        %v514 = vunpack.c.l.b16 %v496
        %v515 = vpack.c.b16 %v514, %v513
        %vm517 = vcmask 130048
        %v519 = vsel %vm517, %v509, 0
        %v522 = vsel %vm517, %v510, 0
        %524 = vmatprep.subr.bf16.mxu0 0
        %525 = vmatpush1.bf16.msra.mxu0 %v515
        %526 = vmatprep.subr.bf16.mxu0 0
        %527 = vmatpush1.bf16.msra.mxu0 0
        %528 = vmatprep.subr.bf16.mxu0 0
        %529 = vmatpush1.bf16.msra.mxu0 0
        %530 = vmatprep.subr.bf16.mxu0 0
        %531 = vmatpush1.bf16.msra.mxu0 0
        %532 = vmatprep.subr.bf16.mxu0 0
        %533 = vmatpush1.bf16.msra.mxu0 0
        %534 = vmatprep.subr.bf16.mxu0 0
        %535 = vmatpush1.bf16.msra.mxu0 0
        %536 = vmatprep.subr.bf16.mxu0 0
        %537 = vmatpush1.bf16.msra.mxu0 0
        %538 = vmatprep.subr.bf16.mxu0 0
        %539 = vmatpush1.bf16.msra.mxu0 0
        %540 = vmatprep.subr.bf16.mxu0 0
        %541 = vmatpush1.bf16.msra.mxu0 0
        %542 = vmatprep.subr.bf16.mxu0 0
        %543 = vmatpush1.bf16.msra.mxu0 0
        %544 = vmatprep.subr.bf16.mxu0 0
        %545 = vmatpush1.bf16.msra.mxu0 0
        %546 = vmatprep.subr.bf16.mxu0 0
        %547 = vmatpush1.bf16.msra.mxu0 0
        %548 = vmatprep.subr.bf16.mxu0 0
        %549 = vmatpush1.bf16.msra.mxu0 0
        %550 = vmatprep.subr.bf16.mxu0 0
        %551 = vmatpush1.bf16.msra.mxu0 0
        %552 = vmatprep.subr.bf16.mxu0 0
        %553 = vmatpush1.bf16.msra.mxu0 0
        %554 = vmatprep.subr.bf16.mxu0 0
        %555 = vmatpush1.bf16.msra.mxu0 0
        %556 = vmatprep.mubr.bf16.mxu0 0
        %557 = vmatmul.mubr.bf16.gmra.mrb[0].mxu0 %v519
        %v558 = vpop.f32.mrb[0].mxu0
        %v559 = vadd.f32 0.0, %v558
        %v560 = vpop.f32.mrb[0].mxu0
        %v561 = vpop.f32.mrb[0].mxu0
        %v562 = vadd.f32 0.0, %v561
        %v563 = vpop.f32.mrb[0].mxu0
        %564 = vmatprep.mubr.bf16.mxu0 0
        %565 = vmatmul.mubr.bf16.gmra.mrb[0].mxu0 %v522
        %v566 = vpop.f32.mrb[0].mxu0
        %v567 = vadd.f32 0.0, %v566
        %v568 = vpop.f32.mrb[0].mxu0
        %v569 = vpop.f32.mrb[0].mxu0
        %v570 = vadd.f32 0.0, %v569
        %v571 = vpop.f32.mrb[0].mxu0
        %572 = vdwg.mxu0
        %v573 = vpack.c.bf16 %v562, %v559
        %v574 = vpack.c.bf16 %v570, %v567
        %v577 = vunpack.c.l.b16 %v498
        %v578 = vunpack.c.l.b16 %v499
        %v579 = vpack.c.b16 %v578, %v577
        %581 = vmatprep.subr.bf16.mxu0 0
        %582 = vmatpush1.bf16.msra.mxu0 %v579
        %583 = vmatprep.subr.bf16.mxu0 0
        %584 = vmatpush1.bf16.msra.mxu0 0
        %585 = vmatprep.subr.bf16.mxu0 0
        %586 = vmatpush1.bf16.msra.mxu0 0
        %587 = vmatprep.subr.bf16.mxu0 0
        %588 = vmatpush1.bf16.msra.mxu0 0
        %589 = vmatprep.subr.bf16.mxu0 0
        %590 = vmatpush1.bf16.msra.mxu0 0
        %591 = vmatprep.subr.bf16.mxu0 0
        %592 = vmatpush1.bf16.msra.mxu0 0
        %593 = vmatprep.subr.bf16.mxu0 0
        %594 = vmatpush1.bf16.msra.mxu0 0
        %595 = vmatprep.subr.bf16.mxu0 0
        %596 = vmatpush1.bf16.msra.mxu0 0
        %597 = vmatprep.subr.bf16.mxu0 0
        %598 = vmatpush1.bf16.msra.mxu0 0
        %599 = vmatprep.subr.bf16.mxu0 0
        %600 = vmatpush1.bf16.msra.mxu0 0
        %601 = vmatprep.subr.bf16.mxu0 0
        %602 = vmatpush1.bf16.msra.mxu0 0
        %603 = vmatprep.subr.bf16.mxu0 0
        %604 = vmatpush1.bf16.msra.mxu0 0
        %605 = vmatprep.subr.bf16.mxu0 0
        %606 = vmatpush1.bf16.msra.mxu0 0
        %607 = vmatprep.subr.bf16.mxu0 0
        %608 = vmatpush1.bf16.msra.mxu0 0
        %609 = vmatprep.subr.bf16.mxu0 0
        %610 = vmatpush1.bf16.msra.mxu0 0
        %611 = vmatprep.subr.bf16.mxu0 0
        %612 = vmatpush1.bf16.msra.mxu0 0
        %613 = vmatprep.mubr.bf16.mxu0 0
        %614 = vmatmul.mubr.bf16.gmra.mrb[0].mxu0 %v519
        %v615 = vpop.f32.mrb[0].mxu0
        %v616 = vadd.f32 0.0, %v615
        %v617 = vpop.f32.mrb[0].mxu0
        %v618 = vpop.f32.mrb[0].mxu0
        %v619 = vadd.f32 0.0, %v618
        %v620 = vpop.f32.mrb[0].mxu0
        %621 = vmatprep.mubr.bf16.mxu0 0
        %622 = vmatmul.mubr.bf16.gmra.mrb[0].mxu0 %v522
        %v623 = vpop.f32.mrb[0].mxu0
        %v624 = vadd.f32 0.0, %v623
        %v625 = vpop.f32.mrb[0].mxu0
        %v626 = vpop.f32.mrb[0].mxu0
        %v627 = vadd.f32 0.0, %v626
        %v628 = vpop.f32.mrb[0].mxu0
        %629 = vdwg.mxu0
        %v630 = vpack.c.bf16 %v619, %v616
        %v631 = vpack.c.bf16 %v627, %v624
        %v634 = vunpack.c.l.b16 %v500
        %v635 = vunpack.c.l.b16 %v501
        %v636 = vpack.c.b16 %v635, %v634
        %v638 = vsel %vm517, %v636, 0
        %640 = vmatprep.subr.bf16.mxu0 0
        %641 = vmatpush1.bf16.msra.mxu0 %v573
        %642 = vmatprep.subr.bf16.mxu0 0
        %643 = vmatpush1.bf16.msra.mxu0 0
        %644 = vmatprep.subr.bf16.mxu0 0
        %645 = vmatpush1.bf16.msra.mxu0 0
        %646 = vmatprep.subr.bf16.mxu0 0
        %647 = vmatpush1.bf16.msra.mxu0 0
        %648 = vmatprep.subr.bf16.mxu0 0
        %649 = vmatpush1.bf16.msra.mxu0 0
        %650 = vmatprep.subr.bf16.mxu0 0
        %651 = vmatpush1.bf16.msra.mxu0 0
        %652 = vmatprep.subr.bf16.mxu0 0
        %653 = vmatpush1.bf16.msra.mxu0 0
        %654 = vmatprep.subr.bf16.mxu0 0
        %655 = vmatpush1.bf16.msra.mxu0 0
        %656 = vmatprep.subr.bf16.mxu0 0
        %657 = vmatpush1.bf16.msra.mxu0 0
        %658 = vmatprep.subr.bf16.mxu0 0
        %659 = vmatpush1.bf16.msra.mxu0 0
        %660 = vmatprep.subr.bf16.mxu0 0
        %661 = vmatpush1.bf16.msra.mxu0 0
        %662 = vmatprep.subr.bf16.mxu0 0
        %663 = vmatpush1.bf16.msra.mxu0 0
        %664 = vmatprep.subr.bf16.mxu0 0
        %665 = vmatpush1.bf16.msra.mxu0 0
        %666 = vmatprep.subr.bf16.mxu0 0
        %667 = vmatpush1.bf16.msra.mxu0 0
        %668 = vmatprep.subr.bf16.mxu0 0
        %669 = vmatpush1.bf16.msra.mxu0 0
        %670 = vmatprep.subr.bf16.mxu0 0
        %671 = vmatpush1.bf16.msra.mxu0 0
        %672 = vmatprep.mubr.bf16.mxu0 0
        %673 = vmatmul.mubr.bf16.gmra.mrb[0].mxu0 %v638
        %v674 = vpop.f32.mrb[0].mxu0
        %v675 = vadd.f32 0.0, %v674
        %v676 = vpop.f32.mrb[0].mxu0
        %v677 = vpop.f32.mrb[0].mxu0
        %v678 = vadd.f32 0.0, %v677
        %v679 = vpop.f32.mrb[0].mxu0
        %680 = vdwg.mxu0
        %681 = vmatprep.subr.bf16.mxu0 0
        %682 = vmatpush1.bf16.msra.mxu0 %v574
        %683 = vmatprep.subr.bf16.mxu0 0
        %684 = vmatpush1.bf16.msra.mxu0 0
        %685 = vmatprep.subr.bf16.mxu0 0
        %686 = vmatpush1.bf16.msra.mxu0 0
        %687 = vmatprep.subr.bf16.mxu0 0
        %688 = vmatpush1.bf16.msra.mxu0 0
        %689 = vmatprep.subr.bf16.mxu0 0
        %690 = vmatpush1.bf16.msra.mxu0 0
        %691 = vmatprep.subr.bf16.mxu0 0
        %692 = vmatpush1.bf16.msra.mxu0 0
        %693 = vmatprep.subr.bf16.mxu0 0
        %694 = vmatpush1.bf16.msra.mxu0 0
        %695 = vmatprep.subr.bf16.mxu0 0
        %696 = vmatpush1.bf16.msra.mxu0 0
        %697 = vmatprep.subr.bf16.mxu0 0
        %698 = vmatpush1.bf16.msra.mxu0 0
        %699 = vmatprep.subr.bf16.mxu0 0
        %700 = vmatpush1.bf16.msra.mxu0 0
        %701 = vmatprep.subr.bf16.mxu0 0
        %702 = vmatpush1.bf16.msra.mxu0 0
        %703 = vmatprep.subr.bf16.mxu0 0
        %704 = vmatpush1.bf16.msra.mxu0 0
        %705 = vmatprep.subr.bf16.mxu0 0
        %706 = vmatpush1.bf16.msra.mxu0 0
        %707 = vmatprep.subr.bf16.mxu0 0
        %708 = vmatpush1.bf16.msra.mxu0 0
        %709 = vmatprep.subr.bf16.mxu0 0
        %710 = vmatpush1.bf16.msra.mxu0 0
        %711 = vmatprep.subr.bf16.mxu0 0
        %712 = vmatpush1.bf16.msra.mxu0 0
        %713 = vmatprep.mubr.bf16.mxu0 0
        %714 = vmatmul.mubr.bf16.gmra.mrb[0].mxu0 %v638
        %v715 = vpop.f32.mrb[0].mxu0
        %v716 = vadd.f32 0.0, %v715
        %v717 = vpop.f32.mrb[0].mxu0
        %v718 = vpop.f32.mrb[0].mxu0
        %v719 = vadd.f32 0.0, %v718
        %v720 = vpop.f32.mrb[0].mxu0
        %721 = vdwg.mxu0
        %v724 = vunpack.c.l.b16 %v503
        %v725 = vunpack.c.l.b16 %v504
        %v726 = vpack.c.b16 %v725, %v724
        %v728 = vsel %vm517, %v726, 0
        %730 = vmatprep.subr.bf16.mxu0 0
        %731 = vmatpush1.bf16.msra.mxu0 %v630
        %732 = vmatprep.subr.bf16.mxu0 0
        %733 = vmatpush1.bf16.msra.mxu0 0
        %734 = vmatprep.subr.bf16.mxu0 0
        %735 = vmatpush1.bf16.msra.mxu0 0
        %736 = vmatprep.subr.bf16.mxu0 0
        %737 = vmatpush1.bf16.msra.mxu0 0
        %738 = vmatprep.subr.bf16.mxu0 0
        %739 = vmatpush1.bf16.msra.mxu0 0
        %740 = vmatprep.subr.bf16.mxu0 0
        %741 = vmatpush1.bf16.msra.mxu0 0
        %742 = vmatprep.subr.bf16.mxu0 0
        %743 = vmatpush1.bf16.msra.mxu0 0
        %744 = vmatprep.subr.bf16.mxu0 0
        %745 = vmatpush1.bf16.msra.mxu0 0
        %746 = vmatprep.subr.bf16.mxu0 0
        %747 = vmatpush1.bf16.msra.mxu0 0
        %748 = vmatprep.subr.bf16.mxu0 0
        %749 = vmatpush1.bf16.msra.mxu0 0
        %750 = vmatprep.subr.bf16.mxu0 0
        %751 = vmatpush1.bf16.msra.mxu0 0
        %752 = vmatprep.subr.bf16.mxu0 0
        %753 = vmatpush1.bf16.msra.mxu0 0
        %754 = vmatprep.subr.bf16.mxu0 0
        %755 = vmatpush1.bf16.msra.mxu0 0
        %756 = vmatprep.subr.bf16.mxu0 0
        %757 = vmatpush1.bf16.msra.mxu0 0
        %758 = vmatprep.subr.bf16.mxu0 0
        %759 = vmatpush1.bf16.msra.mxu0 0
        %760 = vmatprep.subr.bf16.mxu0 0
        %761 = vmatpush1.bf16.msra.mxu0 0
        %762 = vmatprep.mubr.bf16.mxu0 0
        %763 = vmatmul.mubr.bf16.gmra.mrb[0].mxu0 %v728
        %v764 = vpop.f32.mrb[0].mxu0
        %v765 = vadd.f32 0.0, %v764
        %v766 = vpop.f32.mrb[0].mxu0
        %v767 = vpop.f32.mrb[0].mxu0
        %v768 = vadd.f32 0.0, %v767
        %v769 = vpop.f32.mrb[0].mxu0
        %770 = vdwg.mxu0
        %771 = vmatprep.subr.bf16.mxu0 0
        %772 = vmatpush1.bf16.msra.mxu0 %v631
        %773 = vmatprep.subr.bf16.mxu0 0
        %774 = vmatpush1.bf16.msra.mxu0 0
        %775 = vmatprep.subr.bf16.mxu0 0
        %776 = vmatpush1.bf16.msra.mxu0 0
        %777 = vmatprep.subr.bf16.mxu0 0
        %778 = vmatpush1.bf16.msra.mxu0 0
        %779 = vmatprep.subr.bf16.mxu0 0
        %780 = vmatpush1.bf16.msra.mxu0 0
        %781 = vmatprep.subr.bf16.mxu0 0
        %782 = vmatpush1.bf16.msra.mxu0 0
        %783 = vmatprep.subr.bf16.mxu0 0
        %784 = vmatpush1.bf16.msra.mxu0 0
        %785 = vmatprep.subr.bf16.mxu0 0
        %786 = vmatpush1.bf16.msra.mxu0 0
        %787 = vmatprep.subr.bf16.mxu0 0
        %788 = vmatpush1.bf16.msra.mxu0 0
        %789 = vmatprep.subr.bf16.mxu0 0
        %790 = vmatpush1.bf16.msra.mxu0 0
        %791 = vmatprep.subr.bf16.mxu0 0
        %792 = vmatpush1.bf16.msra.mxu0 0
        %793 = vmatprep.subr.bf16.mxu0 0
        %794 = vmatpush1.bf16.msra.mxu0 0
        %795 = vmatprep.subr.bf16.mxu0 0
        %796 = vmatpush1.bf16.msra.mxu0 0
        %797 = vmatprep.subr.bf16.mxu0 0
        %798 = vmatpush1.bf16.msra.mxu0 0
        %799 = vmatprep.subr.bf16.mxu0 0
        %800 = vmatpush1.bf16.msra.mxu0 0
        %801 = vmatprep.subr.bf16.mxu0 0
        %802 = vmatpush1.bf16.msra.mxu0 0
        %803 = vmatprep.mubr.bf16.mxu0 0
        %804 = vmatmul.mubr.bf16.gmra.mrb[0].mxu0 %v728
        %v805 = vpop.f32.mrb[0].mxu0
        %v806 = vadd.f32 0.0, %v805
        %v807 = vpop.f32.mrb[0].mxu0
        %v808 = vpop.f32.mrb[0].mxu0
        %v809 = vadd.f32 0.0, %v808
        %v810 = vpop.f32.mrb[0].mxu0
        %811 = vdwg.mxu0
        %v812 = vsub.f32 %v675, %v765
        %v813 = vsub.f32 %v678, %v768
        %v814 = vsub.f32 %v716, %v806
        %v815 = vsub.f32 %v719, %v809
        %816 = vmatprep.subr.bf16.mxu0 0
        %817 = vmatpush1.bf16.msra.mxu0 %v573
        %818 = vmatprep.subr.bf16.mxu0 0
        %819 = vmatpush1.bf16.msra.mxu0 0
        %820 = vmatprep.subr.bf16.mxu0 0
        %821 = vmatpush1.bf16.msra.mxu0 0
        %822 = vmatprep.subr.bf16.mxu0 0
        %823 = vmatpush1.bf16.msra.mxu0 0
        %824 = vmatprep.subr.bf16.mxu0 0
        %825 = vmatpush1.bf16.msra.mxu0 0
        %826 = vmatprep.subr.bf16.mxu0 0
        %827 = vmatpush1.bf16.msra.mxu0 0
        %828 = vmatprep.subr.bf16.mxu0 0
        %829 = vmatpush1.bf16.msra.mxu0 0
        %830 = vmatprep.subr.bf16.mxu0 0
        %831 = vmatpush1.bf16.msra.mxu0 0
        %832 = vmatprep.subr.bf16.mxu0 0
        %833 = vmatpush1.bf16.msra.mxu0 0
        %834 = vmatprep.subr.bf16.mxu0 0
        %835 = vmatpush1.bf16.msra.mxu0 0
        %836 = vmatprep.subr.bf16.mxu0 0
        %837 = vmatpush1.bf16.msra.mxu0 0
        %838 = vmatprep.subr.bf16.mxu0 0
        %839 = vmatpush1.bf16.msra.mxu0 0
        %840 = vmatprep.subr.bf16.mxu0 0
        %841 = vmatpush1.bf16.msra.mxu0 0
        %842 = vmatprep.subr.bf16.mxu0 0
        %843 = vmatpush1.bf16.msra.mxu0 0
        %844 = vmatprep.subr.bf16.mxu0 0
        %845 = vmatpush1.bf16.msra.mxu0 0
        %846 = vmatprep.subr.bf16.mxu0 0
        %847 = vmatpush1.bf16.msra.mxu0 0
        %848 = vmatprep.mubr.bf16.mxu0 0
        %849 = vmatmul.mubr.bf16.gmra.mrb[0].mxu0 %v728
        %v850 = vpop.f32.mrb[0].mxu0
        %v851 = vadd.f32 0.0, %v850
        %v852 = vpop.f32.mrb[0].mxu0
        %v853 = vpop.f32.mrb[0].mxu0
        %v854 = vadd.f32 0.0, %v853
        %v855 = vpop.f32.mrb[0].mxu0
        %856 = vdwg.mxu0
        %857 = vmatprep.subr.bf16.mxu0 0
        %858 = vmatpush1.bf16.msra.mxu0 %v574
        %859 = vmatprep.subr.bf16.mxu0 0
        %860 = vmatpush1.bf16.msra.mxu0 0
        %861 = vmatprep.subr.bf16.mxu0 0
        %862 = vmatpush1.bf16.msra.mxu0 0
        %863 = vmatprep.subr.bf16.mxu0 0
        %864 = vmatpush1.bf16.msra.mxu0 0
        %865 = vmatprep.subr.bf16.mxu0 0
        %866 = vmatpush1.bf16.msra.mxu0 0
        %867 = vmatprep.subr.bf16.mxu0 0
        %868 = vmatpush1.bf16.msra.mxu0 0
        %869 = vmatprep.subr.bf16.mxu0 0
        %870 = vmatpush1.bf16.msra.mxu0 0
        %871 = vmatprep.subr.bf16.mxu0 0
        %872 = vmatpush1.bf16.msra.mxu0 0
        %873 = vmatprep.subr.bf16.mxu0 0
        %874 = vmatpush1.bf16.msra.mxu0 0
        %875 = vmatprep.subr.bf16.mxu0 0
        %876 = vmatpush1.bf16.msra.mxu0 0
        %877 = vmatprep.subr.bf16.mxu0 0
        %878 = vmatpush1.bf16.msra.mxu0 0
        %879 = vmatprep.subr.bf16.mxu0 0
        %880 = vmatpush1.bf16.msra.mxu0 0
        %881 = vmatprep.subr.bf16.mxu0 0
        %882 = vmatpush1.bf16.msra.mxu0 0
        %883 = vmatprep.subr.bf16.mxu0 0
        %884 = vmatpush1.bf16.msra.mxu0 0
        %885 = vmatprep.subr.bf16.mxu0 0
        %886 = vmatpush1.bf16.msra.mxu0 0
        %887 = vmatprep.subr.bf16.mxu0 0
        %888 = vmatpush1.bf16.msra.mxu0 0
        %889 = vmatprep.mubr.bf16.mxu0 0
        %890 = vmatmul.mubr.bf16.gmra.mrb[0].mxu0 %v728
        %v891 = vpop.f32.mrb[0].mxu0
        %v892 = vadd.f32 0.0, %v891
        %v893 = vpop.f32.mrb[0].mxu0
        %v894 = vpop.f32.mrb[0].mxu0
        %v895 = vadd.f32 0.0, %v894
        %v896 = vpop.f32.mrb[0].mxu0
        %897 = vdwg.mxu0
        %898 = vmatprep.subr.bf16.mxu0 0
        %899 = vmatpush1.bf16.msra.mxu0 %v630
        %900 = vmatprep.subr.bf16.mxu0 0
        %901 = vmatpush1.bf16.msra.mxu0 0
        %902 = vmatprep.subr.bf16.mxu0 0
        %903 = vmatpush1.bf16.msra.mxu0 0
        %904 = vmatprep.subr.bf16.mxu0 0
        %905 = vmatpush1.bf16.msra.mxu0 0
        %906 = vmatprep.subr.bf16.mxu0 0
        %907 = vmatpush1.bf16.msra.mxu0 0
        %908 = vmatprep.subr.bf16.mxu0 0
        %909 = vmatpush1.bf16.msra.mxu0 0
        %910 = vmatprep.subr.bf16.mxu0 0
        %911 = vmatpush1.bf16.msra.mxu0 0
        %912 = vmatprep.subr.bf16.mxu0 0
        %913 = vmatpush1.bf16.msra.mxu0 0
        %914 = vmatprep.subr.bf16.mxu0 0
        %915 = vmatpush1.bf16.msra.mxu0 0
        %916 = vmatprep.subr.bf16.mxu0 0
        %917 = vmatpush1.bf16.msra.mxu0 0
        %918 = vmatprep.subr.bf16.mxu0 0
        %919 = vmatpush1.bf16.msra.mxu0 0
        %920 = vmatprep.subr.bf16.mxu0 0
        %921 = vmatpush1.bf16.msra.mxu0 0
        %922 = vmatprep.subr.bf16.mxu0 0
        %923 = vmatpush1.bf16.msra.mxu0 0
        %924 = vmatprep.subr.bf16.mxu0 0
        %925 = vmatpush1.bf16.msra.mxu0 0
        %926 = vmatprep.subr.bf16.mxu0 0
        %927 = vmatpush1.bf16.msra.mxu0 0
        %928 = vmatprep.subr.bf16.mxu0 0
        %929 = vmatpush1.bf16.msra.mxu0 0
        %930 = vmatprep.mubr.bf16.mxu0 0
        %931 = vmatmul.mubr.bf16.gmra.mrb[0].mxu0 %v638
        %v932 = vpop.f32.mrb[0].mxu0
        %v933 = vadd.f32 %v851, %v932
        %v934 = vpop.f32.mrb[0].mxu0
        %v935 = vpop.f32.mrb[0].mxu0
        %v936 = vadd.f32 %v854, %v935
        %v937 = vpop.f32.mrb[0].mxu0
        %938 = vdwg.mxu0
        %939 = vmatprep.subr.bf16.mxu0 0
        %940 = vmatpush1.bf16.msra.mxu0 %v631
        %941 = vmatprep.subr.bf16.mxu0 0
        %942 = vmatpush1.bf16.msra.mxu0 0
        %943 = vmatprep.subr.bf16.mxu0 0
        %944 = vmatpush1.bf16.msra.mxu0 0
        %945 = vmatprep.subr.bf16.mxu0 0
        %946 = vmatpush1.bf16.msra.mxu0 0
        %947 = vmatprep.subr.bf16.mxu0 0
        %948 = vmatpush1.bf16.msra.mxu0 0
        %949 = vmatprep.subr.bf16.mxu0 0
        %950 = vmatpush1.bf16.msra.mxu0 0
        %951 = vmatprep.subr.bf16.mxu0 0
        %952 = vmatpush1.bf16.msra.mxu0 0
        %953 = vmatprep.subr.bf16.mxu0 0
        %954 = vmatpush1.bf16.msra.mxu0 0
        %955 = vmatprep.subr.bf16.mxu0 0
        %956 = vmatpush1.bf16.msra.mxu0 0
        %957 = vmatprep.subr.bf16.mxu0 0
        %958 = vmatpush1.bf16.msra.mxu0 0
        %959 = vmatprep.subr.bf16.mxu0 0
        %960 = vmatpush1.bf16.msra.mxu0 0
        %961 = vmatprep.subr.bf16.mxu0 0
        %962 = vmatpush1.bf16.msra.mxu0 0
        %963 = vmatprep.subr.bf16.mxu0 0
        %964 = vmatpush1.bf16.msra.mxu0 0
        %965 = vmatprep.subr.bf16.mxu0 0
        %966 = vmatpush1.bf16.msra.mxu0 0
        %967 = vmatprep.subr.bf16.mxu0 0
        %968 = vmatpush1.bf16.msra.mxu0 0
        %969 = vmatprep.subr.bf16.mxu0 0
        %970 = vmatpush1.bf16.msra.mxu0 0
        %971 = vmatprep.mubr.bf16.mxu0 0
        %972 = vmatmul.mubr.bf16.gmra.mrb[0].mxu0 %v638
        %v973 = vpop.f32.mrb[0].mxu0
        %v974 = vadd.f32 %v892, %v973
        %v975 = vpop.f32.mrb[0].mxu0
        %v976 = vpop.f32.mrb[0].mxu0
        %v977 = vadd.f32 %v895, %v976
        %v978 = vpop.f32.mrb[0].mxu0
        %979 = vdwg.mxu0
        %v980 = vld [vmem:[%s372] sm:$0xff]
        %v981 = vld [vmem:[%s372 + $0x8] sm:$0xff]
        %v982 = vld [vmem:[%s372 + $0x10] sm:$0xff]
        %v983 = vld [vmem:[%s372 + $0x18] sm:$0xff]
        %s984 = scalar_lea.vmem %s372, 32 [#allocation2]
        %v985 = vld [vmem:[%s984] sm:$0xff]
        %v986 = vld [vmem:[%s984 + $0x8] sm:$0xff]
        %v987 = vld [vmem:[%s984 + $0x10] sm:$0xff]
        %v988 = vld [vmem:[%s984 + $0x18] sm:$0xff]
        %v989 = vmul.f32 %v812, %v980
        %v990 = vmul.f32 %v813, %v981
        %v991 = vmul.f32 %v814, %v982
        %v992 = vmul.f32 %v815, %v983
        %v993 = vmul.f32 %v933, %v985
        %v994 = vmul.f32 %v936, %v986
        %v995 = vmul.f32 %v974, %v987
        %v996 = vmul.f32 %v977, %v988
        %v997 = vsub.f32 %v989, %v993
        %v998 = vsub.f32 %v990, %v994
        %v999 = vsub.f32 %v991, %v995
        %v1000 = vsub.f32 %v992, %v996
        %v1001 = vpack.c.bf16 %v998, %v997
        %v1002 = vpack.c.bf16 %v1000, %v999
        %v1003 = vmul.f32 %v812, %v985
        %v1004 = vmul.f32 %v813, %v986
        %v1005 = vmul.f32 %v814, %v987
        %v1006 = vmul.f32 %v815, %v988
        %v1007 = vmul.f32 %v933, %v980
        %v1008 = vmul.f32 %v936, %v981
        %v1009 = vmul.f32 %v974, %v982
        %v1010 = vmul.f32 %v977, %v983
        %v1011 = vadd.f32 %v1003, %v1007
        %v1012 = vadd.f32 %v1004, %v1008
        %v1013 = vadd.f32 %v1005, %v1009
        %v1014 = vadd.f32 %v1006, %v1010
        %v1015 = vpack.c.bf16 %v1012, %v1011
        %v1016 = vpack.c.bf16 %v1014, %v1013
        %1017 = vmatprep.subr.bf16.mxu0 0
        %1018 = vmatpush1.bf16.msra.mxu0 %v1015
        %1019 = vmatprep.subr.bf16.mxu0 0
        %1020 = vmatpush1.bf16.msra.mxu0 0
        %1021 = vmatprep.subr.bf16.mxu0 0
        %1022 = vmatpush1.bf16.msra.mxu0 0
        %1023 = vmatprep.subr.bf16.mxu0 0
        %1024 = vmatpush1.bf16.msra.mxu0 0
        %1025 = vmatprep.subr.bf16.mxu0 0
        %1026 = vmatpush1.bf16.msra.mxu0 0
        %1027 = vmatprep.subr.bf16.mxu0 0
        %1028 = vmatpush1.bf16.msra.mxu0 0
        %1029 = vmatprep.subr.bf16.mxu0 0
        %1030 = vmatpush1.bf16.msra.mxu0 0
        %1031 = vmatprep.subr.bf16.mxu0 0
        %1032 = vmatpush1.bf16.msra.mxu0 0
        %1033 = vmatprep.subr.bf16.mxu0 0
        %1034 = vmatpush1.bf16.msra.mxu0 0
        %1035 = vmatprep.subr.bf16.mxu0 0
        %1036 = vmatpush1.bf16.msra.mxu0 0
        %1037 = vmatprep.subr.bf16.mxu0 0
        %1038 = vmatpush1.bf16.msra.mxu0 0
        %1039 = vmatprep.subr.bf16.mxu0 0
        %1040 = vmatpush1.bf16.msra.mxu0 0
        %1041 = vmatprep.subr.bf16.mxu0 0
        %1042 = vmatpush1.bf16.msra.mxu0 0
        %1043 = vmatprep.subr.bf16.mxu0 0
        %1044 = vmatpush1.bf16.msra.mxu0 0
        %1045 = vmatprep.subr.bf16.mxu0 0
        %1046 = vmatpush1.bf16.msra.mxu0 0
        %1047 = vmatprep.subr.bf16.mxu0 0
        %1048 = vmatpush1.bf16.msra.mxu0 0
        %1049 = vmatprep.mubr.bf16.mxu0 0
        %1050 = vmatmul.mubr.bf16.gmra.mrb[0].mxu0 %v728
        %v1051 = vpop.f32.mrb[0].mxu0
        %v1052 = vadd.f32 0.0, %v1051
        %v1053 = vpop.f32.mrb[0].mxu0
        %v1054 = vpop.f32.mrb[0].mxu0
        %v1055 = vadd.f32 0.0, %v1054
        %v1056 = vpop.f32.mrb[0].mxu0
        %1057 = vdwg.mxu0
        %1058 = vmatprep.subr.bf16.mxu0 0
        %1059 = vmatpush1.bf16.msra.mxu0 %v1016
        %1060 = vmatprep.subr.bf16.mxu0 0
        %1061 = vmatpush1.bf16.msra.mxu0 0
        %1062 = vmatprep.subr.bf16.mxu0 0
        %1063 = vmatpush1.bf16.msra.mxu0 0
        %1064 = vmatprep.subr.bf16.mxu0 0
        %1065 = vmatpush1.bf16.msra.mxu0 0
        %1066 = vmatprep.subr.bf16.mxu0 0
        %1067 = vmatpush1.bf16.msra.mxu0 0
        %1068 = vmatprep.subr.bf16.mxu0 0
        %1069 = vmatpush1.bf16.msra.mxu0 0
        %1070 = vmatprep.subr.bf16.mxu0 0
        %1071 = vmatpush1.bf16.msra.mxu0 0
        %1072 = vmatprep.subr.bf16.mxu0 0
        %1073 = vmatpush1.bf16.msra.mxu0 0
        %1074 = vmatprep.subr.bf16.mxu0 0
        %1075 = vmatpush1.bf16.msra.mxu0 0
        %1076 = vmatprep.subr.bf16.mxu0 0
        %1077 = vmatpush1.bf16.msra.mxu0 0
        %1078 = vmatprep.subr.bf16.mxu0 0
        %1079 = vmatpush1.bf16.msra.mxu0 0
        %1080 = vmatprep.subr.bf16.mxu0 0
        %1081 = vmatpush1.bf16.msra.mxu0 0
        %1082 = vmatprep.subr.bf16.mxu0 0
        %1083 = vmatpush1.bf16.msra.mxu0 0
        %1084 = vmatprep.subr.bf16.mxu0 0
        %1085 = vmatpush1.bf16.msra.mxu0 0
        %1086 = vmatprep.subr.bf16.mxu0 0
        %1087 = vmatpush1.bf16.msra.mxu0 0
        %1088 = vmatprep.subr.bf16.mxu0 0
        %1089 = vmatpush1.bf16.msra.mxu0 0
        %1090 = vmatprep.mubr.bf16.mxu0 0
        %1091 = vmatmul.mubr.bf16.gmra.mrb[0].mxu0 %v728
        %v1092 = vpop.f32.mrb[0].mxu0
        %v1093 = vadd.f32 0.0, %v1092
        %v1094 = vpop.f32.mrb[0].mxu0
        %v1095 = vpop.f32.mrb[0].mxu0
        %v1096 = vadd.f32 0.0, %v1095
        %v1097 = vpop.f32.mrb[0].mxu0
        %1098 = vdwg.mxu0
        %1099 = vmatprep.subr.bf16.mxu0 0
        %1100 = vmatpush1.bf16.msra.mxu0 %v1001
        %1101 = vmatprep.subr.bf16.mxu0 0
        %1102 = vmatpush1.bf16.msra.mxu0 0
        %1103 = vmatprep.subr.bf16.mxu0 0
        %1104 = vmatpush1.bf16.msra.mxu0 0
        %1105 = vmatprep.subr.bf16.mxu0 0
        %1106 = vmatpush1.bf16.msra.mxu0 0
        %1107 = vmatprep.subr.bf16.mxu0 0
        %1108 = vmatpush1.bf16.msra.mxu0 0
        %1109 = vmatprep.subr.bf16.mxu0 0
        %1110 = vmatpush1.bf16.msra.mxu0 0
        %1111 = vmatprep.subr.bf16.mxu0 0
        %1112 = vmatpush1.bf16.msra.mxu0 0
        %1113 = vmatprep.subr.bf16.mxu0 0
        %1114 = vmatpush1.bf16.msra.mxu0 0
        %1115 = vmatprep.subr.bf16.mxu0 0
        %1116 = vmatpush1.bf16.msra.mxu0 0
        %1117 = vmatprep.subr.bf16.mxu0 0
        %1118 = vmatpush1.bf16.msra.mxu0 0
        %1119 = vmatprep.subr.bf16.mxu0 0
        %1120 = vmatpush1.bf16.msra.mxu0 0
        %1121 = vmatprep.subr.bf16.mxu0 0
        %1122 = vmatpush1.bf16.msra.mxu0 0
        %1123 = vmatprep.subr.bf16.mxu0 0
        %1124 = vmatpush1.bf16.msra.mxu0 0
        %1125 = vmatprep.subr.bf16.mxu0 0
        %1126 = vmatpush1.bf16.msra.mxu0 0
        %1127 = vmatprep.subr.bf16.mxu0 0
        %1128 = vmatpush1.bf16.msra.mxu0 0
        %1129 = vmatprep.subr.bf16.mxu0 0
        %1130 = vmatpush1.bf16.msra.mxu0 0
        %1131 = vmatprep.mubr.bf16.mxu0 0
        %1132 = vmatmul.mubr.bf16.gmra.mrb[0].mxu0 %v638
        %v1133 = vpop.f32.mrb[0].mxu0
        %v1134 = vadd.f32 %v1052, %v1133
        %v1135 = vpop.f32.mrb[0].mxu0
        %v1136 = vpop.f32.mrb[0].mxu0
        %v1137 = vadd.f32 %v1055, %v1136
        %v1138 = vpop.f32.mrb[0].mxu0
        %1139 = vdwg.mxu0
        %1140 = vmatprep.subr.bf16.mxu0 0
        %1141 = vmatpush1.bf16.msra.mxu0 %v1002
        %1142 = vmatprep.subr.bf16.mxu0 0
        %1143 = vmatpush1.bf16.msra.mxu0 0
        %1144 = vmatprep.subr.bf16.mxu0 0
        %1145 = vmatpush1.bf16.msra.mxu0 0
        %1146 = vmatprep.subr.bf16.mxu0 0
        %1147 = vmatpush1.bf16.msra.mxu0 0
        %1148 = vmatprep.subr.bf16.mxu0 0
        %1149 = vmatpush1.bf16.msra.mxu0 0
        %1150 = vmatprep.subr.bf16.mxu0 0
        %1151 = vmatpush1.bf16.msra.mxu0 0
        %1152 = vmatprep.subr.bf16.mxu0 0
        %1153 = vmatpush1.bf16.msra.mxu0 0
        %1154 = vmatprep.subr.bf16.mxu0 0
        %1155 = vmatpush1.bf16.msra.mxu0 0
        %1156 = vmatprep.subr.bf16.mxu0 0
        %1157 = vmatpush1.bf16.msra.mxu0 0
        %1158 = vmatprep.subr.bf16.mxu0 0
        %1159 = vmatpush1.bf16.msra.mxu0 0
        %1160 = vmatprep.subr.bf16.mxu0 0
        %1161 = vmatpush1.bf16.msra.mxu0 0
        %1162 = vmatprep.subr.bf16.mxu0 0
        %1163 = vmatpush1.bf16.msra.mxu0 0
        %1164 = vmatprep.subr.bf16.mxu0 0
        %1165 = vmatpush1.bf16.msra.mxu0 0
        %1166 = vmatprep.subr.bf16.mxu0 0
        %1167 = vmatpush1.bf16.msra.mxu0 0
        %1168 = vmatprep.subr.bf16.mxu0 0
        %1169 = vmatpush1.bf16.msra.mxu0 0
        %1170 = vmatprep.subr.bf16.mxu0 0
        %1171 = vmatpush1.bf16.msra.mxu0 0
        %1172 = vmatprep.mubr.bf16.mxu0 0
        %1173 = vmatmul.mubr.bf16.gmra.mrb[0].mxu0 %v638
        %v1174 = vpop.f32.mrb[0].mxu0
        %v1175 = vadd.f32 %v1093, %v1174
        %v1176 = vpop.f32.mrb[0].mxu0
        %v1177 = vpop.f32.mrb[0].mxu0
        %v1178 = vadd.f32 %v1096, %v1177
        %v1179 = vpop.f32.mrb[0].mxu0
        %1180 = vdwg.mxu0
        %1181 = vmatprep.subr.bf16.mxu0 0
        %1182 = vmatpush1.bf16.msra.mxu0 %v1015
        %1183 = vmatprep.subr.bf16.mxu0 0
        %1184 = vmatpush1.bf16.msra.mxu0 0
        %1185 = vmatprep.subr.bf16.mxu0 0
        %1186 = vmatpush1.bf16.msra.mxu0 0
        %1187 = vmatprep.subr.bf16.mxu0 0
        %1188 = vmatpush1.bf16.msra.mxu0 0
        %1189 = vmatprep.subr.bf16.mxu0 0
        %1190 = vmatpush1.bf16.msra.mxu0 0
        %1191 = vmatprep.subr.bf16.mxu0 0
        %1192 = vmatpush1.bf16.msra.mxu0 0
        %1193 = vmatprep.subr.bf16.mxu0 0
        %1194 = vmatpush1.bf16.msra.mxu0 0
        %1195 = vmatprep.subr.bf16.mxu0 0
        %1196 = vmatpush1.bf16.msra.mxu0 0
        %1197 = vmatprep.subr.bf16.mxu0 0
        %1198 = vmatpush1.bf16.msra.mxu0 0
        %1199 = vmatprep.subr.bf16.mxu0 0
        %1200 = vmatpush1.bf16.msra.mxu0 0
        %1201 = vmatprep.subr.bf16.mxu0 0
        %1202 = vmatpush1.bf16.msra.mxu0 0
        %1203 = vmatprep.subr.bf16.mxu0 0
        %1204 = vmatpush1.bf16.msra.mxu0 0
        %1205 = vmatprep.subr.bf16.mxu0 0
        %1206 = vmatpush1.bf16.msra.mxu0 0
        %1207 = vmatprep.subr.bf16.mxu0 0
        %1208 = vmatpush1.bf16.msra.mxu0 0
        %1209 = vmatprep.subr.bf16.mxu0 0
        %1210 = vmatpush1.bf16.msra.mxu0 0
        %1211 = vmatprep.subr.bf16.mxu0 0
        %1212 = vmatpush1.bf16.msra.mxu0 0
        %1213 = vmatprep.mubr.bf16.mxu0 0
        %1214 = vmatmul.mubr.bf16.gmra.mrb[0].mxu0 %v638
        %v1215 = vpop.f32.mrb[0].mxu0
        %v1216 = vadd.f32 0.0, %v1215
        %v1217 = vpop.f32.mrb[0].mxu0
        %v1218 = vpop.f32.mrb[0].mxu0
        %v1219 = vadd.f32 0.0, %v1218
        %v1220 = vpop.f32.mrb[0].mxu0
        %1221 = vdwg.mxu0
        %1222 = vmatprep.subr.bf16.mxu0 0
        %1223 = vmatpush1.bf16.msra.mxu0 %v1016
        %1224 = vmatprep.subr.bf16.mxu0 0
        %1225 = vmatpush1.bf16.msra.mxu0 0
        %1226 = vmatprep.subr.bf16.mxu0 0
        %1227 = vmatpush1.bf16.msra.mxu0 0
        %1228 = vmatprep.subr.bf16.mxu0 0
        %1229 = vmatpush1.bf16.msra.mxu0 0
        %1230 = vmatprep.subr.bf16.mxu0 0
        %1231 = vmatpush1.bf16.msra.mxu0 0
        %1232 = vmatprep.subr.bf16.mxu0 0
        %1233 = vmatpush1.bf16.msra.mxu0 0
        %1234 = vmatprep.subr.bf16.mxu0 0
        %1235 = vmatpush1.bf16.msra.mxu0 0
        %1236 = vmatprep.subr.bf16.mxu0 0
        %1237 = vmatpush1.bf16.msra.mxu0 0
        %1238 = vmatprep.subr.bf16.mxu0 0
        %1239 = vmatpush1.bf16.msra.mxu0 0
        %1240 = vmatprep.subr.bf16.mxu0 0
        %1241 = vmatpush1.bf16.msra.mxu0 0
        %1242 = vmatprep.subr.bf16.mxu0 0
        %1243 = vmatpush1.bf16.msra.mxu0 0
        %1244 = vmatprep.subr.bf16.mxu0 0
        %1245 = vmatpush1.bf16.msra.mxu0 0
        %1246 = vmatprep.subr.bf16.mxu0 0
        %1247 = vmatpush1.bf16.msra.mxu0 0
        %1248 = vmatprep.subr.bf16.mxu0 0
        %1249 = vmatpush1.bf16.msra.mxu0 0
        %1250 = vmatprep.subr.bf16.mxu0 0
        %1251 = vmatpush1.bf16.msra.mxu0 0
        %1252 = vmatprep.subr.bf16.mxu0 0
        %1253 = vmatpush1.bf16.msra.mxu0 0
        %1254 = vmatprep.mubr.bf16.mxu0 0
        %1255 = vmatmul.mubr.bf16.gmra.mrb[0].mxu0 %v638
        %v1256 = vpop.f32.mrb[0].mxu0
        %v1257 = vadd.f32 0.0, %v1256
        %v1258 = vpop.f32.mrb[0].mxu0
        %v1259 = vpop.f32.mrb[0].mxu0
        %v1260 = vadd.f32 0.0, %v1259
        %v1261 = vpop.f32.mrb[0].mxu0
        %1262 = vdwg.mxu0
        %1263 = vmatprep.subr.bf16.mxu0 0
        %1264 = vmatpush1.bf16.msra.mxu0 %v1001
        %1265 = vmatprep.subr.bf16.mxu0 0
        %1266 = vmatpush1.bf16.msra.mxu0 0
        %1267 = vmatprep.subr.bf16.mxu0 0
        %1268 = vmatpush1.bf16.msra.mxu0 0
        %1269 = vmatprep.subr.bf16.mxu0 0
        %1270 = vmatpush1.bf16.msra.mxu0 0
        %1271 = vmatprep.subr.bf16.mxu0 0
        %1272 = vmatpush1.bf16.msra.mxu0 0
        %1273 = vmatprep.subr.bf16.mxu0 0
        %1274 = vmatpush1.bf16.msra.mxu0 0
        %1275 = vmatprep.subr.bf16.mxu0 0
        %1276 = vmatpush1.bf16.msra.mxu0 0
        %1277 = vmatprep.subr.bf16.mxu0 0
        %1278 = vmatpush1.bf16.msra.mxu0 0
        %1279 = vmatprep.subr.bf16.mxu0 0
        %1280 = vmatpush1.bf16.msra.mxu0 0
        %1281 = vmatprep.subr.bf16.mxu0 0
        %1282 = vmatpush1.bf16.msra.mxu0 0
        %1283 = vmatprep.subr.bf16.mxu0 0
        %1284 = vmatpush1.bf16.msra.mxu0 0
        %1285 = vmatprep.subr.bf16.mxu0 0
        %1286 = vmatpush1.bf16.msra.mxu0 0
        %1287 = vmatprep.subr.bf16.mxu0 0
        %1288 = vmatpush1.bf16.msra.mxu0 0
        %1289 = vmatprep.subr.bf16.mxu0 0
        %1290 = vmatpush1.bf16.msra.mxu0 0
        %1291 = vmatprep.subr.bf16.mxu0 0
        %1292 = vmatpush1.bf16.msra.mxu0 0
        %1293 = vmatprep.subr.bf16.mxu0 0
        %1294 = vmatpush1.bf16.msra.mxu0 0
        %1295 = vmatprep.mubr.bf16.mxu0 0
        %1296 = vmatmul.mubr.bf16.gmra.mrb[0].mxu0 %v728
        %v1297 = vpop.f32.mrb[0].mxu0
        %v1298 = vadd.f32 0.0, %v1297
        %v1299 = vpop.f32.mrb[0].mxu0
        %v1300 = vpop.f32.mrb[0].mxu0
        %v1301 = vadd.f32 0.0, %v1300
        %v1302 = vpop.f32.mrb[0].mxu0
        %1303 = vdwg.mxu0
        %1304 = vmatprep.subr.bf16.mxu0 0
        %1305 = vmatpush1.bf16.msra.mxu0 %v1002
        %1306 = vmatprep.subr.bf16.mxu0 0
        %1307 = vmatpush1.bf16.msra.mxu0 0
        %1308 = vmatprep.subr.bf16.mxu0 0
        %1309 = vmatpush1.bf16.msra.mxu0 0
        %1310 = vmatprep.subr.bf16.mxu0 0
        %1311 = vmatpush1.bf16.msra.mxu0 0
        %1312 = vmatprep.subr.bf16.mxu0 0
        %1313 = vmatpush1.bf16.msra.mxu0 0
        %1314 = vmatprep.subr.bf16.mxu0 0
        %1315 = vmatpush1.bf16.msra.mxu0 0
        %1316 = vmatprep.subr.bf16.mxu0 0
        %1317 = vmatpush1.bf16.msra.mxu0 0
        %1318 = vmatprep.subr.bf16.mxu0 0
        %1319 = vmatpush1.bf16.msra.mxu0 0
        %1320 = vmatprep.subr.bf16.mxu0 0
        %1321 = vmatpush1.bf16.msra.mxu0 0
        %1322 = vmatprep.subr.bf16.mxu0 0
        %1323 = vmatpush1.bf16.msra.mxu0 0
        %1324 = vmatprep.subr.bf16.mxu0 0
        %1325 = vmatpush1.bf16.msra.mxu0 0
        %1326 = vmatprep.subr.bf16.mxu0 0
        %1327 = vmatpush1.bf16.msra.mxu0 0
        %1328 = vmatprep.subr.bf16.mxu0 0
        %1329 = vmatpush1.bf16.msra.mxu0 0
        %1330 = vmatprep.subr.bf16.mxu0 0
        %1331 = vmatpush1.bf16.msra.mxu0 0
        %1332 = vmatprep.subr.bf16.mxu0 0
        %1333 = vmatpush1.bf16.msra.mxu0 0
        %1334 = vmatprep.subr.bf16.mxu0 0
        %1335 = vmatpush1.bf16.msra.mxu0 0
        %1336 = vmatprep.mubr.bf16.mxu0 0
        %1337 = vmatmul.mubr.bf16.gmra.mrb[0].mxu0 %v728
        %v1338 = vpop.f32.mrb[0].mxu0
        %v1339 = vadd.f32 0.0, %v1338
        %v1340 = vpop.f32.mrb[0].mxu0
        %v1341 = vpop.f32.mrb[0].mxu0
        %v1342 = vadd.f32 0.0, %v1341
        %v1343 = vpop.f32.mrb[0].mxu0
        %1344 = vdwg.mxu0
        %v1345 = vsub.f32 %v1216, %v1298
        %v1346 = vsub.f32 %v1219, %v1301
        %v1347 = vsub.f32 %v1257, %v1339
        %v1348 = vsub.f32 %v1260, %v1342
        %v1349 = vpack.c.bf16 %v1137, %v1134
        %v1350 = vpack.c.bf16 %v1178, %v1175
        %v1351 = vpack.c.bf16 %v1346, %v1345
        %v1352 = vpack.c.bf16 %v1348, %v1347
        %v1354 = vsel %vm517, %v1351, 0
        %v1357 = vsel %vm517, %v1352, 0
        %1359 = vmatprep.subr.bf16.mxu0 0
        %1360 = vmatpush1.bf16.msra.mxu0 %v579
        %1361 = vmatprep.subr.bf16.mxu0 0
        %1362 = vmatpush1.bf16.msra.mxu0 0
        %1363 = vmatprep.subr.bf16.mxu0 0
        %1364 = vmatpush1.bf16.msra.mxu0 0
        %1365 = vmatprep.subr.bf16.mxu0 0
        %1366 = vmatpush1.bf16.msra.mxu0 0
        %1367 = vmatprep.subr.bf16.mxu0 0
        %1368 = vmatpush1.bf16.msra.mxu0 0
        %1369 = vmatprep.subr.bf16.mxu0 0
        %1370 = vmatpush1.bf16.msra.mxu0 0
        %1371 = vmatprep.subr.bf16.mxu0 0
        %1372 = vmatpush1.bf16.msra.mxu0 0
        %1373 = vmatprep.subr.bf16.mxu0 0
        %1374 = vmatpush1.bf16.msra.mxu0 0
        %1375 = vmatprep.subr.bf16.mxu0 0
        %1376 = vmatpush1.bf16.msra.mxu0 0
        %1377 = vmatprep.subr.bf16.mxu0 0
        %1378 = vmatpush1.bf16.msra.mxu0 0
        %1379 = vmatprep.subr.bf16.mxu0 0
        %1380 = vmatpush1.bf16.msra.mxu0 0
        %1381 = vmatprep.subr.bf16.mxu0 0
        %1382 = vmatpush1.bf16.msra.mxu0 0
        %1383 = vmatprep.subr.bf16.mxu0 0
        %1384 = vmatpush1.bf16.msra.mxu0 0
        %1385 = vmatprep.subr.bf16.mxu0 0
        %1386 = vmatpush1.bf16.msra.mxu0 0
        %1387 = vmatprep.subr.bf16.mxu0 0
        %1388 = vmatpush1.bf16.msra.mxu0 0
        %1389 = vmatprep.subr.bf16.mxu0 0
        %1390 = vmatpush1.bf16.msra.mxu0 0
        %1391 = vmatprep.mubr.bf16.mxu0 0
        %1392 = vmatmul.mubr.bf16.gmra.mrb[0].mxu0 %v1354
        %v1393 = vpop.f32.mrb[0].mxu0
        %v1394 = vadd.f32 0.0, %v1393
        %v1395 = vpop.f32.mrb[0].mxu0
        %v1396 = vpop.f32.mrb[0].mxu0
        %v1397 = vadd.f32 0.0, %v1396
        %v1398 = vpop.f32.mrb[0].mxu0
        %1399 = vmatprep.mubr.bf16.mxu0 0
        %1400 = vmatmul.mubr.bf16.gmra.mrb[0].mxu0 %v1357
        %v1401 = vpop.f32.mrb[0].mxu0
        %v1402 = vadd.f32 0.0, %v1401
        %v1403 = vpop.f32.mrb[0].mxu0
        %v1404 = vpop.f32.mrb[0].mxu0
        %v1405 = vadd.f32 0.0, %v1404
        %v1406 = vpop.f32.mrb[0].mxu0
        %1407 = vdwg.mxu0
        %v1409 = vsel %vm517, %v1349, 0
        %v1412 = vsel %vm517, %v1350, 0
        %1414 = vmatprep.subr.bf16.mxu0 0
        %1415 = vmatpush1.bf16.msra.mxu0 %v515
        %1416 = vmatprep.subr.bf16.mxu0 0
        %1417 = vmatpush1.bf16.msra.mxu0 0
        %1418 = vmatprep.subr.bf16.mxu0 0
        %1419 = vmatpush1.bf16.msra.mxu0 0
        %1420 = vmatprep.subr.bf16.mxu0 0
        %1421 = vmatpush1.bf16.msra.mxu0 0
        %1422 = vmatprep.subr.bf16.mxu0 0
        %1423 = vmatpush1.bf16.msra.mxu0 0
        %1424 = vmatprep.subr.bf16.mxu0 0
        %1425 = vmatpush1.bf16.msra.mxu0 0
        %1426 = vmatprep.subr.bf16.mxu0 0
        %1427 = vmatpush1.bf16.msra.mxu0 0
        %1428 = vmatprep.subr.bf16.mxu0 0
        %1429 = vmatpush1.bf16.msra.mxu0 0
        %1430 = vmatprep.subr.bf16.mxu0 0
        %1431 = vmatpush1.bf16.msra.mxu0 0
        %1432 = vmatprep.subr.bf16.mxu0 0
        %1433 = vmatpush1.bf16.msra.mxu0 0
        %1434 = vmatprep.subr.bf16.mxu0 0
        %1435 = vmatpush1.bf16.msra.mxu0 0
        %1436 = vmatprep.subr.bf16.mxu0 0
        %1437 = vmatpush1.bf16.msra.mxu0 0
        %1438 = vmatprep.subr.bf16.mxu0 0
        %1439 = vmatpush1.bf16.msra.mxu0 0
        %1440 = vmatprep.subr.bf16.mxu0 0
        %1441 = vmatpush1.bf16.msra.mxu0 0
        %1442 = vmatprep.subr.bf16.mxu0 0
        %1443 = vmatpush1.bf16.msra.mxu0 0
        %1444 = vmatprep.subr.bf16.mxu0 0
        %1445 = vmatpush1.bf16.msra.mxu0 0
        %1446 = vmatprep.mubr.bf16.mxu0 0
        %1447 = vmatmul.mubr.bf16.gmra.mrb[0].mxu0 %v1409
        %v1448 = vpop.f32.mrb[0].mxu0
        %v1449 = vadd.f32 %v1394, %v1448
        %v1450 = vpop.f32.mrb[0].mxu0
        %v1451 = vpop.f32.mrb[0].mxu0
        %v1452 = vadd.f32 %v1397, %v1451
        %v1453 = vpop.f32.mrb[0].mxu0
        %1454 = vmatprep.mubr.bf16.mxu0 0
        %1455 = vmatmul.mubr.bf16.gmra.mrb[0].mxu0 %v1412
        %v1456 = vpop.f32.mrb[0].mxu0
        %v1457 = vadd.f32 %v1402, %v1456
        %v1458 = vpop.f32.mrb[0].mxu0
        %v1459 = vpop.f32.mrb[0].mxu0
        %v1460 = vadd.f32 %v1405, %v1459
        %v1461 = vpop.f32.mrb[0].mxu0
        %1462 = vdwg.mxu0
        %1463 = vst.msk [vmem:[%s429] sm:$0xff] %vm517, %v1449
        %1464 = vst.msk [vmem:[%s429 + $0x8] sm:$0xff] %vm517, %v1452
        %1465 = vst.msk [vmem:[%s429 + $0x10] sm:$0xff] %vm517, %v1457
        %1466 = vst.msk [vmem:[%s429 + $0x18] sm:$0xff] %vm517, %v1460
        %s1467 = sand.u32 %s188, 1
        %s1468 = scalar_lea.sflag [#allocation4], %s1467
        %s1469 = sand.u32 %s188, 1
        %s1470 = smul.addr %s1469, 32
        %s1471 = scalar_lea.vmem [#allocation3], %s1470
        // Predicated region
        $region75: #{adaptive_global_filter.1} parent=69 // pred_check
          %p1472 = pneg %p198
        $region76: #{adaptive_global_filter.1} parent=69 // pred_check_branch
          %1474 = sbr.rel (%p1472) target = $region78
        $region77: #{adaptive_global_filter.1} parent=69 // pred_region
          %s1475 = smul.u32 4, %s23
          %s1477 = ssub.s32 512, 512
          %1478 = vsyncadd %s1468, %s1477
          %s1479 = smul.addr %s22, 8
          %s1480 = sadd.s32 %s1475, %s1479
          %s1481 = smul.addr %s1480, 128
          %s1482 = scalar_lea.hbm %s4, %s1481
          %s1483 = sshll.u32 %s1471, 4
          %s1484 = int_to_ptr.vmem [resolvable:$true] %s1483
          %1489 = dma.vmem_to_hbm [thread:$0]  %s1484, 512, %s1482, %s1468, 128, 128, 8
        $region78: #{adaptive_global_filter.1} parent=69 // pred_fallthru
          _
      $region70: #{adaptive_global_filter.1} parent=5 // pred_fallthru
        _
      %p1490 = scmp.le.s32.totalorder 2, %s13
      // Predicated region
      $region79: #{adaptive_global_filter.1} parent=5 // pred_check
        %p1491 = pneg %p1490
      $region80: #{adaptive_global_filter.1} parent=5 // pred_check_branch
        %1493 = sbr.rel (%p1491) target = $region82
      $region81: #{adaptive_global_filter.1} parent=5 // pred_region
        %s1494 = ssub.s32 %s13, 2
        // Predicated region
        $region83: #{adaptive_global_filter.1} parent=81 // pred_check
          %p1495 = pneg %p204
        $region84: #{adaptive_global_filter.1} parent=81 // pred_check_branch
          %1497 = sbr.rel (%p1495) target = $region86
        $region85: #{adaptive_global_filter.1} parent=81 // pred_region
          %s1498 = sand.u32 %s189, 1
          %s1499 = scalar_lea.sflag [#allocation4], %s1498
          %s1500 = sand.u32 %s189, 1
          %s1501 = smul.addr %s1500, 32
          %s1502 = scalar_lea.vmem [#allocation3], %s1501
          %1503 = dma.done %s1499, 512
        $region86: #{adaptive_global_filter.1} parent=81 // pred_fallthru
          _
      $region82: #{adaptive_global_filter.1} parent=5 // pred_fallthru
        _
    $region6: #{adaptive_global_filter.1} parent=1 // loop_footer
      %s17 = sadd.s32 1, %s13
    $region7: #{adaptive_global_filter.1} parent=1 // loop_footer_branch
      %12 = sbr.rel target = $region3
    $region8: #{adaptive_global_filter.1} parent=1 // loop_exit
      _
    %1504 = vsyncpa [#allocation4], 1
    %s1505 = scalar_lea.sflag [#allocation4], 1
    %1506 = vsyncpa %s1505, 1

</llo_original>
